<compile_context>
chip_gen: v6e
topology: v6e:2x2x1
jax: 0.10.0
libtpu: 0.0.40
codegen_flags: <defaults>
</compile_context>

<pallas_src>
import functools

import jax
import jax.numpy as jnp
from jax.experimental import pallas as pl
from jax.experimental.pallas import tpu as pltpu

LANE = 128


def _round_up(x, m):
    return ((x + m - 1) // m) * m


def _pick_row_tile(m, cap=2048):
    """Largest multiple-of-8 divisor of m that is <= cap (fallback: m)."""
    if m <= cap:
        return m
    for t in range(cap - cap % 8, 7, -8):
        if m % t == 0:
            return t
    return m


# ---------------------------------------------------------------------------
# Pallas kernels
# ---------------------------------------------------------------------------
def _conv3x3_row_kernel(r0_ref, r1_ref, r2_ref, w_ref, b_ref,
                        o_ref, sum_ref, ssq_ref, *, w_out):
    """One output row of a 3x3 'same' conv + bias, with fused accumulation of
    per-channel sum / sum-of-squares (BatchNorm batch statistics).

    r*_ref : (W+2, Cin_pad)        bf16  padded input rows h, h+1, h+2
    w_ref  : (9, Cin_pad, Cout_pad) bf16  tap-major weights (VMEM-resident)
    b_ref  : (1, Cout_pad)          f32
    o_ref  : (W, Cout_pad)          f32  conv output row
    sum_ref, ssq_ref : (1, Cout_pad) f32 grid-wide accumulators
    """
    cout = o_ref.shape[-1]
    acc = jnp.zeros((w_out, cout), jnp.float32)
    rows = (r0_ref, r1_ref, r2_ref)
    for dh in range(3):
        row = rows[dh][...]
        for dw in range(3):
            acc += jnp.dot(row[dw:dw + w_out, :], w_ref[dh * 3 + dw],
                           preferred_element_type=jnp.float32)
    acc = acc + b_ref[...]
    o_ref[...] = acc

    @pl.when(jnp.logical_and(pl.program_id(0) == 0, pl.program_id(1) == 0))
    def _init():
        sum_ref[...] = jnp.zeros_like(sum_ref)
        ssq_ref[...] = jnp.zeros_like(ssq_ref)

    sum_ref[...] += jnp.sum(acc, axis=0, keepdims=True)
    ssq_ref[...] += jnp.sum(acc * acc, axis=0, keepdims=True)


def _bn_relu_kernel(x_ref, s_ref, ss_ref, g_ref, b_ref, o_ref, *, count):
    """Training-mode BatchNorm2d (global batch stats, biased variance,
    eps=1e-5) + affine + ReLU over an (TM, C) tile."""
    inv_m = 1.0 / count
    mean = s_ref[...] * inv_m
    var = ss_ref[...] * inv_m - mean * mean
    scale = jax.lax.rsqrt(var + 1e-5) * g_ref[...]
    y = (x_ref[...] - mean) * scale + b_ref[...]
    o_ref[...] = jnp.maximum(y, 0.0).astype(o_ref.dtype)


# ---------------------------------------------------------------------------
# Wrappers around pallas_call
# ---------------------------------------------------------------------------
def conv3x3_pallas(x_nhwc, w9, bias):
    """3x3 'same' conv over a channel-padded bf16 NHWC tensor.

    Returns (conv_out_f32, per-channel sum, per-channel sum-of-squares).
    """
    N, H, W, Cin_p = x_nhwc.shape
    Cout_p = w9.shape[-1]
    xp = jnp.pad(x_nhwc, ((0, 0), (1, 1), (1, 1), (0, 0)))  # spatial halo

    def row_spec(dh):
        return pl.BlockSpec((None, None, W + 2, Cin_p),
                            lambda n, h: (n, h + dh, 0, 0))

    kernel = functools.partial(_conv3x3_row_kernel, w_out=W)
    out, ch_sum, ch_ssq = pl.pallas_call(
        kernel,
        grid=(N, H),
        in_specs=[
            row_spec(0), row_spec(1), row_spec(2),
            pl.BlockSpec((9, Cin_p, Cout_p), lambda n, h: (0, 0, 0)),
            pl.BlockSpec((1, Cout_p), lambda n, h: (0, 0)),
        ],
        out_specs=[
            pl.BlockSpec((None, None, W, Cout_p), lambda n, h: (n, h, 0, 0)),
            pl.BlockSpec((1, Cout_p), lambda n, h: (0, 0)),
            pl.BlockSpec((1, Cout_p), lambda n, h: (0, 0)),
        ],
        out_shape=[
            jax.ShapeDtypeStruct((N, H, W, Cout_p), jnp.float32),
            jax.ShapeDtypeStruct((1, Cout_p), jnp.float32),
            jax.ShapeDtypeStruct((1, Cout_p), jnp.float32),
        ],
        compiler_params=pltpu.CompilerParams(
            # sum/ssq accumulate across the whole grid -> reduction semantics.
            dimension_semantics=("arbitrary", "arbitrary")),
    )(xp, xp, xp, w9, bias)
    return out, ch_sum, ch_ssq


def bn_relu_pallas(x_nhwc, ch_sum, ch_ssq, gamma, beta, out_dtype):
    """M-tiled BatchNorm (using pre-accumulated global stats) + ReLU."""
    N, H, W, C = x_nhwc.shape
    M = N * H * W
    x2d = x_nhwc.reshape(M, C)
    tm = _pick_row_tile(M)
    kernel = functools.partial(_bn_relu_kernel, count=float(M))
    vec = lambda i: (0, 0)
    out = pl.pallas_call(
        kernel,
        grid=(pl.cdiv(M, tm),),
        in_specs=[
            pl.BlockSpec((tm, C), lambda i: (i, 0)),
            pl.BlockSpec((1, C), vec),
            pl.BlockSpec((1, C), vec),
            pl.BlockSpec((1, C), vec),
            pl.BlockSpec((1, C), vec),
        ],
        out_specs=pl.BlockSpec((tm, C), lambda i: (i, 0)),
        out_shape=jax.ShapeDtypeStruct((M, C), out_dtype),
        compiler_params=pltpu.CompilerParams(
            dimension_semantics=("parallel",)),  # 2 TCs on v7x
    )(x2d, ch_sum, ch_ssq, gamma, beta)
    return out.reshape(N, H, W, C)


# ---------------------------------------------------------------------------
# Bilinear upsample (align_corners=True), JAX glue via interpolation matrices
# ---------------------------------------------------------------------------
# TODO(synk): upsample is a small fixed-weight interpolation; kept as JAX glue.
def _interp_matrix(n_in, n_out):
    if n_in == 1:
        return jnp.ones((n_out, 1), jnp.float32)
    s = jnp.arange(n_out, dtype=jnp.float32) * (n_in - 1) / (n_out - 1)
    i0 = jnp.clip(jnp.floor(s).astype(jnp.int32), 0, n_in - 2)
    frac = s - i0.astype(jnp.float32)
    return (jax.nn.one_hot(i0, n_in, dtype=jnp.float32) * (1.0 - frac)[:, None]
            + jax.nn.one_hot(i0 + 1, n_in, dtype=jnp.float32) * frac[:, None])


def upsample_bilinear_x2(x_nhwc):
    N, H, W, C = x_nhwc.shape
    Ah = _interp_matrix(H, 2 * H)          # (2H, H)
    Aw = _interp_matrix(W, 2 * W)          # (2W, W)
    y = jnp.einsum('oh,nhwc->nowc', Ah, x_nhwc)
    y = jnp.einsum('pw,nowc->nopc', Aw, y)
    return y


# ---------------------------------------------------------------------------
# Up module (bilinear=True)
# ---------------------------------------------------------------------------
class UpPallas:
    def __init__(self, in_channels, out_channels, key):
        mid = in_channels // 2
        self.in_channels = in_channels
        self.mid = mid
        self.out_channels = out_channels

        def conv_init(k, cout, cin):
            fan_in = cin * 9
            bound = 1.0 / (fan_in ** 0.5)
            kw, kb = jax.random.split(k)
            w = jax.random.uniform(kw, (cout, cin, 3, 3), jnp.float32, -bound, bound)
            b = jax.random.uniform(kb, (cout,), jnp.float32, -bound, bound)
            return w, b

        k1, k2 = jax.random.split(key)
        w1, b1 = conv_init(k1, mid, in_channels)
        w2, b2 = conv_init(k2, out_channels, mid)

        # lane-dense (multiple-of-128) channel layout throughout the DoubleConv
        self.cin1_p = _round_up(in_channels, LANE)
        self.mid_p = _round_up(mid, LANE)
        self.cout_p = _round_up(out_channels, LANE)

        def pack_w(w, cin_p, cout_p):
            # (Cout, Cin, 3, 3) -> (9, Cin, Cout) tap-major -> zero-pad -> bf16
            cout, cin = w.shape[:2]
            w9 = jnp.transpose(w, (2, 3, 1, 0)).reshape(9, cin, cout)
            w9 = jnp.pad(w9, ((0, 0), (0, cin_p - cin), (0, cout_p - cout)))
            return w9.astype(jnp.bfloat16)

        def pad_vec(v, c_p):
            return jnp.pad(v, (0, c_p - v.shape[0])).reshape(1, c_p).astype(jnp.float32)

        self.w9_1 = pack_w(w1, self.cin1_p, self.mid_p)
        self.b1 = pad_vec(b1, self.mid_p)
        self.w9_2 = pack_w(w2, self.mid_p, self.cout_p)
        self.b2 = pad_vec(b2, self.cout_p)

        # BatchNorm affine params (PyTorch default init), zero-padded so the
        # padded channels stay exactly zero through BN+ReLU.
        self.g1 = pad_vec(jnp.ones((mid,)), self.mid_p)
        self.beta1 = pad_vec(jnp.zeros((mid,)), self.mid_p)
        self.g2 = pad_vec(jnp.ones((out_channels,)), self.cout_p)
        self.beta2 = pad_vec(jnp.zeros((out_channels,)), self.cout_p)

    def __call__(self, x1_nchw, x2_nchw):
        # NCHW -> NHWC (channels on the TPU lane axis)
        x1 = jnp.transpose(x1_nchw, (0, 2, 3, 1)).astype(jnp.float32)
        x2 = jnp.transpose(x2_nchw, (0, 2, 3, 1)).astype(jnp.float32)

        # bilinear x2 upsample (align_corners=True) + F.pad to x2 spatial size
        x1 = upsample_bilinear_x2(x1)
        diffY = x2.shape[1] - x1.shape[1]
        diffX = x2.shape[2] - x1.shape[2]
        x1 = jnp.pad(x1, ((0, 0),
                          (diffY // 2, diffY - diffY // 2),
                          (diffX // 2, diffX - diffX // 2),
                          (0, 0)))

        # torch.cat([x2, x1], dim=1): folded into the single channel-pad /
        # bf16-cast pass that the conv kernel needs anyway (no extra pass).
        N, H, W, _ = x2.shape
        cat_c = x2.shape[-1] + x1.shape[-1]
        pad_c = self.cin1_p - cat_c
        x = jnp.concatenate(
            [x2, x1, jnp.zeros((N, H, W, pad_c), jnp.float32)], axis=-1
        ).astype(jnp.bfloat16)

        # DoubleConv: (conv3x3 -> BN(batch stats) -> ReLU) * 2
        c1, s1, ss1 = conv3x3_pallas(x, self.w9_1, self.b1)
        h1 = bn_relu_pallas(c1, s1, ss1, self.g1, self.beta1, jnp.bfloat16)
        c2, s2, ss2 = conv3x3_pallas(h1, self.w9_2, self.b2)
        h2 = bn_relu_pallas(c2, s2, ss2, self.g2, self.beta2, jnp.float32)

        # drop channel padding, back to NCHW
        h2 = h2[..., :self.out_channels]
        return jnp.transpose(h2, (0, 3, 1, 2))


if __name__ == "__main__":
    key = jax.random.PRNGKey(0)
    k_params, k_x1, k_x2 = jax.random.split(key, 3)

    in_channels, out_channels = 8, 4
    N, H, W = 2, 8, 8
    # x1: deeper feature map (in_channels // 2 channels, half spatial)
    x1 = jax.random.normal(k_x1, (N, in_channels // 2, H, W), jnp.float32)
    # x2: skip connection (in_channels // 2 channels, full spatial)
    x2 = jax.random.normal(k_x2, (N, in_channels // 2, 2 * H, 2 * W), jnp.float32)

    up = UpPallas(in_channels, out_channels, k_params)
    out = up(x1, x2)
    out = jax.block_until_ready(out)

    assert out.shape == (N, out_channels, 2 * H, 2 * W), out.shape
    assert bool(jnp.all(jnp.isfinite(out)))
    assert bool(jnp.all(out >= 0.0))  # ReLU output
    print("KERNEL_OK")
</pallas_src>

<mosaic_0001>
module attributes {stable_mosaic.version = 11 : i64} {
  func.func @_conv3x3_row_kernel(%arg0: i32, %arg1: i32, %arg2: memref<1x1x18x128xbf16, #tpu.memory_space<vmem>>, %arg3: memref<1x1x18x128xbf16, #tpu.memory_space<vmem>>, %arg4: memref<1x1x18x128xbf16, #tpu.memory_space<vmem>>, %arg5: memref<9x128x128xbf16, #tpu.memory_space<vmem>>, %arg6: memref<1x128xf32, #tpu.memory_space<vmem>>, %arg7: memref<1x1x16x128xf32, #tpu.memory_space<vmem>>, %arg8: memref<1x128xf32, #tpu.memory_space<vmem>>, %arg9: memref<1x128xf32, #tpu.memory_space<vmem>>) attributes {dimension_semantics = [#tpu.dimension_semantics<arbitrary>, #tpu.dimension_semantics<arbitrary>], iteration_bounds = array<i64: 2, 16>, scalar_prefetch = 0 : i64, scratch_operands = 0 : i64, tpu.core_type = #tpu.core_type<tc>, window_params = [{transform_indices = @transform_0, window_bounds = array<i64: 1, 1, 18, 128>}, {transform_indices = @transform_1, window_bounds = array<i64: 1, 1, 18, 128>}, {transform_indices = @transform_2, window_bounds = array<i64: 1, 1, 18, 128>}, {pipeline_mode = #tpu.pipeline_mode<synchronous>, transform_indices = @transform_3, window_bounds = array<i64: 9, 128, 128>}, {pipeline_mode = #tpu.pipeline_mode<synchronous>, transform_indices = @transform_4, window_bounds = array<i64: 1, 128>}, {transform_indices = @transform_5, window_bounds = array<i64: 1, 1, 16, 128>}, {pipeline_mode = #tpu.pipeline_mode<synchronous>, transform_indices = @transform_6, window_bounds = array<i64: 1, 128>}, {pipeline_mode = #tpu.pipeline_mode<synchronous>, transform_indices = @transform_7, window_bounds = array<i64: 1, 128>}]} {
    %cst = arith.constant 0.000000e+00 : f32
    %0 = vector.broadcast %cst : f32 to vector<16x128xf32>
    %c0 = arith.constant 0 : index
    %c0_0 = arith.constant 0 : index
    %c0_1 = arith.constant 0 : index
    %c0_2 = arith.constant 0 : index
    %1 = vector.load %arg2[%c0, %c0_0, %c0_1, %c0_2] : memref<1x1x18x128xbf16, #tpu.memory_space<vmem>>, vector<1x1x18x128xbf16>
    %2 = vector.shape_cast %1 : vector<1x1x18x128xbf16> to vector<18x128xbf16>
    %3 = vector.extract_strided_slice %2 {offsets = [0, 0], sizes = [16, 128], strides = [1, 1]} : vector<18x128xbf16> to vector<16x128xbf16>
    %c0_3 = arith.constant 0 : index
    %c0_4 = arith.constant 0 : index
    %c0_5 = arith.constant 0 : index
    %4 = vector.load %arg5[%c0_3, %c0_4, %c0_5] : memref<9x128x128xbf16, #tpu.memory_space<vmem>>, vector<1x128x128xbf16>
    %5 = vector.shape_cast %4 : vector<1x128x128xbf16> to vector<128x128xbf16>
    %cst_6 = arith.constant dense<0.000000e+00> : vector<16x128xf32>
    %6 = tpu.matmul %3, %5, %cst_6 {dimension_numbers = #tpu.dot_dimension_numbers<[1], [0], [0], [1], [0, 0, 1, 1], [], []>} : vector<16x128xbf16>, vector<128x128xbf16>, vector<16x128xf32> -> vector<16x128xf32>
    %7 = arith.addf %0, %6 : vector<16x128xf32>
    %8 = vector.extract_strided_slice %2 {offsets = [1, 0], sizes = [16, 128], strides = [1, 1]} : vector<18x128xbf16> to vector<16x128xbf16>
    %c1 = arith.constant 1 : index
    %c0_7 = arith.constant 0 : index
    %c0_8 = arith.constant 0 : index
    %9 = vector.load %arg5[%c1, %c0_7, %c0_8] : memref<9x128x128xbf16, #tpu.memory_space<vmem>>, vector<1x128x128xbf16>
    %10 = vector.shape_cast %9 : vector<1x128x128xbf16> to vector<128x128xbf16>
    %cst_9 = arith.constant dense<0.000000e+00> : vector<16x128xf32>
    %11 = tpu.matmul %8, %10, %cst_9 {dimension_numbers = #tpu.dot_dimension_numbers<[1], [0], [0], [1], [0, 0, 1, 1], [], []>} : vector<16x128xbf16>, vector<128x128xbf16>, vector<16x128xf32> -> vector<16x128xf32>
    %12 = arith.addf %7, %11 : vector<16x128xf32>
    %13 = vector.extract_strided_slice %2 {offsets = [2, 0], sizes = [16, 128], strides = [1, 1]} : vector<18x128xbf16> to vector<16x128xbf16>
    %c2 = arith.constant 2 : index
    %c0_10 = arith.constant 0 : index
    %c0_11 = arith.constant 0 : index
    %14 = vector.load %arg5[%c2, %c0_10, %c0_11] : memref<9x128x128xbf16, #tpu.memory_space<vmem>>, vector<1x128x128xbf16>
    %15 = vector.shape_cast %14 : vector<1x128x128xbf16> to vector<128x128xbf16>
    %cst_12 = arith.constant dense<0.000000e+00> : vector<16x128xf32>
    %16 = tpu.matmul %13, %15, %cst_12 {dimension_numbers = #tpu.dot_dimension_numbers<[1], [0], [0], [1], [0, 0, 1, 1], [], []>} : vector<16x128xbf16>, vector<128x128xbf16>, vector<16x128xf32> -> vector<16x128xf32>
    %17 = arith.addf %12, %16 : vector<16x128xf32>
    %c0_13 = arith.constant 0 : index
    %c0_14 = arith.constant 0 : index
    %c0_15 = arith.constant 0 : index
    %c0_16 = arith.constant 0 : index
    %18 = vector.load %arg3[%c0_13, %c0_14, %c0_15, %c0_16] : memref<1x1x18x128xbf16, #tpu.memory_space<vmem>>, vector<1x1x18x128xbf16>
    %19 = vector.shape_cast %18 : vector<1x1x18x128xbf16> to vector<18x128xbf16>
    %20 = vector.extract_strided_slice %19 {offsets = [0, 0], sizes = [16, 128], strides = [1, 1]} : vector<18x128xbf16> to vector<16x128xbf16>
    %c3 = arith.constant 3 : index
    %c0_17 = arith.constant 0 : index
    %c0_18 = arith.constant 0 : index
    %21 = vector.load %arg5[%c3, %c0_17, %c0_18] : memref<9x128x128xbf16, #tpu.memory_space<vmem>>, vector<1x128x128xbf16>
    %22 = vector.shape_cast %21 : vector<1x128x128xbf16> to vector<128x128xbf16>
    %cst_19 = arith.constant dense<0.000000e+00> : vector<16x128xf32>
    %23 = tpu.matmul %20, %22, %cst_19 {dimension_numbers = #tpu.dot_dimension_numbers<[1], [0], [0], [1], [0, 0, 1, 1], [], []>} : vector<16x128xbf16>, vector<128x128xbf16>, vector<16x128xf32> -> vector<16x128xf32>
    %24 = arith.addf %17, %23 : vector<16x128xf32>
    %25 = vector.extract_strided_slice %19 {offsets = [1, 0], sizes = [16, 128], strides = [1, 1]} : vector<18x128xbf16> to vector<16x128xbf16>
    %c4 = arith.constant 4 : index
    %c0_20 = arith.constant 0 : index
    %c0_21 = arith.constant 0 : index
    %26 = vector.load %arg5[%c4, %c0_20, %c0_21] : memref<9x128x128xbf16, #tpu.memory_space<vmem>>, vector<1x128x128xbf16>
    %27 = vector.shape_cast %26 : vector<1x128x128xbf16> to vector<128x128xbf16>
    %cst_22 = arith.constant dense<0.000000e+00> : vector<16x128xf32>
    %28 = tpu.matmul %25, %27, %cst_22 {dimension_numbers = #tpu.dot_dimension_numbers<[1], [0], [0], [1], [0, 0, 1, 1], [], []>} : vector<16x128xbf16>, vector<128x128xbf16>, vector<16x128xf32> -> vector<16x128xf32>
    %29 = arith.addf %24, %28 : vector<16x128xf32>
    %30 = vector.extract_strided_slice %19 {offsets = [2, 0], sizes = [16, 128], strides = [1, 1]} : vector<18x128xbf16> to vector<16x128xbf16>
    %c5 = arith.constant 5 : index
    %c0_23 = arith.constant 0 : index
    %c0_24 = arith.constant 0 : index
    %31 = vector.load %arg5[%c5, %c0_23, %c0_24] : memref<9x128x128xbf16, #tpu.memory_space<vmem>>, vector<1x128x128xbf16>
    %32 = vector.shape_cast %31 : vector<1x128x128xbf16> to vector<128x128xbf16>
    %cst_25 = arith.constant dense<0.000000e+00> : vector<16x128xf32>
    %33 = tpu.matmul %30, %32, %cst_25 {dimension_numbers = #tpu.dot_dimension_numbers<[1], [0], [0], [1], [0, 0, 1, 1], [], []>} : vector<16x128xbf16>, vector<128x128xbf16>, vector<16x128xf32> -> vector<16x128xf32>
    %34 = arith.addf %29, %33 : vector<16x128xf32>
    %c0_26 = arith.constant 0 : index
    %c0_27 = arith.constant 0 : index
    %c0_28 = arith.constant 0 : index
    %c0_29 = arith.constant 0 : index
    %35 = vector.load %arg4[%c0_26, %c0_27, %c0_28, %c0_29] : memref<1x1x18x128xbf16, #tpu.memory_space<vmem>>, vector<1x1x18x128xbf16>
    %36 = vector.shape_cast %35 : vector<1x1x18x128xbf16> to vector<18x128xbf16>
    %37 = vector.extract_strided_slice %36 {offsets = [0, 0], sizes = [16, 128], strides = [1, 1]} : vector<18x128xbf16> to vector<16x128xbf16>
    %c6 = arith.constant 6 : index
    %c0_30 = arith.constant 0 : index
    %c0_31 = arith.constant 0 : index
    %38 = vector.load %arg5[%c6, %c0_30, %c0_31] : memref<9x128x128xbf16, #tpu.memory_space<vmem>>, vector<1x128x128xbf16>
    %39 = vector.shape_cast %38 : vector<1x128x128xbf16> to vector<128x128xbf16>
    %cst_32 = arith.constant dense<0.000000e+00> : vector<16x128xf32>
    %40 = tpu.matmul %37, %39, %cst_32 {dimension_numbers = #tpu.dot_dimension_numbers<[1], [0], [0], [1], [0, 0, 1, 1], [], []>} : vector<16x128xbf16>, vector<128x128xbf16>, vector<16x128xf32> -> vector<16x128xf32>
    %41 = arith.addf %34, %40 : vector<16x128xf32>
    %42 = vector.extract_strided_slice %36 {offsets = [1, 0], sizes = [16, 128], strides = [1, 1]} : vector<18x128xbf16> to vector<16x128xbf16>
    %c7 = arith.constant 7 : index
    %c0_33 = arith.constant 0 : index
    %c0_34 = arith.constant 0 : index
    %43 = vector.load %arg5[%c7, %c0_33, %c0_34] : memref<9x128x128xbf16, #tpu.memory_space<vmem>>, vector<1x128x128xbf16>
    %44 = vector.shape_cast %43 : vector<1x128x128xbf16> to vector<128x128xbf16>
    %cst_35 = arith.constant dense<0.000000e+00> : vector<16x128xf32>
    %45 = tpu.matmul %42, %44, %cst_35 {dimension_numbers = #tpu.dot_dimension_numbers<[1], [0], [0], [1], [0, 0, 1, 1], [], []>} : vector<16x128xbf16>, vector<128x128xbf16>, vector<16x128xf32> -> vector<16x128xf32>
    %46 = arith.addf %41, %45 : vector<16x128xf32>
    %47 = vector.extract_strided_slice %36 {offsets = [2, 0], sizes = [16, 128], strides = [1, 1]} : vector<18x128xbf16> to vector<16x128xbf16>
    %c8 = arith.constant 8 : index
    %c0_36 = arith.constant 0 : index
    %c0_37 = arith.constant 0 : index
    %48 = vector.load %arg5[%c8, %c0_36, %c0_37] : memref<9x128x128xbf16, #tpu.memory_space<vmem>>, vector<1x128x128xbf16>
    %49 = vector.shape_cast %48 : vector<1x128x128xbf16> to vector<128x128xbf16>
    %cst_38 = arith.constant dense<0.000000e+00> : vector<16x128xf32>
    %50 = tpu.matmul %47, %49, %cst_38 {dimension_numbers = #tpu.dot_dimension_numbers<[1], [0], [0], [1], [0, 0, 1, 1], [], []>} : vector<16x128xbf16>, vector<128x128xbf16>, vector<16x128xf32> -> vector<16x128xf32>
    %51 = arith.addf %46, %50 : vector<16x128xf32>
    %c0_39 = arith.constant 0 : index
    %c0_40 = arith.constant 0 : index
    %52 = vector.load %arg6[%c0_39, %c0_40] : memref<1x128xf32, #tpu.memory_space<vmem>>, vector<1x128xf32>
    %53 = vector.broadcast %52 : vector<1x128xf32> to vector<16x128xf32>
    %54 = arith.addf %51, %53 : vector<16x128xf32>
    %c0_41 = arith.constant 0 : index
    %c0_42 = arith.constant 0 : index
    %c0_43 = arith.constant 0 : index
    %c0_44 = arith.constant 0 : index
    %55 = vector.load %arg7[%c0_41, %c0_42, %c0_43, %c0_44] : memref<1x1x16x128xf32, #tpu.memory_space<vmem>>, vector<1x1x16x128xf32>
    %56 = vector.shape_cast %55 : vector<1x1x16x128xf32> to vector<16x128xf32>
    %57 = vector.shape_cast %54 : vector<16x128xf32> to vector<1x1x16x128xf32>
    tpu.vector_store %arg7[%c0_41, %c0_42, %c0_43, %c0_44], %57 {strides = array<i32>} : memref<1x1x16x128xf32, #tpu.memory_space<vmem>>, vector<1x1x16x128xf32>,
    %c0_i32 = arith.constant 0 : i32
    %58 = arith.cmpi eq, %arg0, %c0_i32 : i32
    %c0_i32_45 = arith.constant 0 : i32
    %59 = arith.cmpi eq, %arg1, %c0_i32_45 : i32
    %60 = arith.andi %58, %59 : i1
    %61 = arith.extui %60 : i1 to i32
    %c0_i32_46 = arith.constant 0 : i32
    %62 = arith.cmpi ne, %61, %c0_i32_46 : i32
    scf.if %62 {
      %cst_57 = arith.constant 0.000000e+00 : f32
      %74 = vector.broadcast %cst_57 : f32 to vector<1x128xf32>
      %c0_58 = arith.constant 0 : index
      %c0_59 = arith.constant 0 : index
      %75 = vector.load %arg8[%c0_58, %c0_59] : memref<1x128xf32, #tpu.memory_space<vmem>>, vector<1x128xf32>
      tpu.vector_store %arg8[%c0_58, %c0_59], %74 {strides = array<i32>} : memref<1x128xf32, #tpu.memory_space<vmem>>, vector<1x128xf32>,
      %cst_60 = arith.constant 0.000000e+00 : f32
      %76 = vector.broadcast %cst_60 : f32 to vector<1x128xf32>
      %c0_61 = arith.constant 0 : index
      %c0_62 = arith.constant 0 : index
      %77 = vector.load %arg9[%c0_61, %c0_62] : memref<1x128xf32, #tpu.memory_space<vmem>>, vector<1x128xf32>
      tpu.vector_store %arg9[%c0_61, %c0_62], %76 {strides = array<i32>} : memref<1x128xf32, #tpu.memory_space<vmem>>, vector<1x128xf32>,
    } else {
    }
    %c0_47 = arith.constant 0 : index
    %c0_48 = arith.constant 0 : index
    %63 = vector.load %arg8[%c0_47, %c0_48] : memref<1x128xf32, #tpu.memory_space<vmem>>, vector<1x128xf32>
    %cst_49 = arith.constant dense<0.000000e+00> : vector<128xf32>
    %64 = vector.multi_reduction <add>, %54, %cst_49 [0] : vector<16x128xf32> to vector<128xf32>
    %65 = vector.shape_cast %64 : vector<128xf32> to vector<1x128xf32>
    %66 = arith.addf %63, %65 : vector<1x128xf32>
    %c0_50 = arith.constant 0 : index
    %c0_51 = arith.constant 0 : index
    %67 = vector.load %arg8[%c0_50, %c0_51] : memref<1x128xf32, #tpu.memory_space<vmem>>, vector<1x128xf32>
    tpu.vector_store %arg8[%c0_50, %c0_51], %66 {strides = array<i32>} : memref<1x128xf32, #tpu.memory_space<vmem>>, vector<1x128xf32>,
    %c0_52 = arith.constant 0 : index
    %c0_53 = arith.constant 0 : index
    %68 = vector.load %arg9[%c0_52, %c0_53] : memref<1x128xf32, #tpu.memory_space<vmem>>, vector<1x128xf32>
    %69 = arith.mulf %54, %54 : vector<16x128xf32>
    %cst_54 = arith.constant dense<0.000000e+00> : vector<128xf32>
    %70 = vector.multi_reduction <add>, %69, %cst_54 [0] : vector<16x128xf32> to vector<128xf32>
    %71 = vector.shape_cast %70 : vector<128xf32> to vector<1x128xf32>
    %72 = arith.addf %68, %71 : vector<1x128xf32>
    %c0_55 = arith.constant 0 : index
    %c0_56 = arith.constant 0 : index
    %73 = vector.load %arg9[%c0_55, %c0_56] : memref<1x128xf32, #tpu.memory_space<vmem>>, vector<1x128xf32>
    tpu.vector_store %arg9[%c0_55, %c0_56], %72 {strides = array<i32>} : memref<1x128xf32, #tpu.memory_space<vmem>>, vector<1x128xf32>,
    return
  }
  func.func @transform_0(%arg0: i32, %arg1: i32) -> (i32, i32, i32, i32) {
    %c0_i32 = arith.constant 0 : i32
    %0 = arith.addi %arg1, %c0_i32 : i32
    %c0_i32_0 = arith.constant 0 : i32
    %c0_i32_1 = arith.constant 0 : i32
    %c0_i32_2 = arith.constant 0 : i32
    return %arg0, %0, %c0_i32_0, %c0_i32_1 : i32, i32, i32, i32
  }
  func.func @transform_1(%arg0: i32, %arg1: i32) -> (i32, i32, i32, i32) {
    %c1_i32 = arith.constant 1 : i32
    %0 = arith.addi %arg1, %c1_i32 : i32
    %c0_i32 = arith.constant 0 : i32
    %c0_i32_0 = arith.constant 0 : i32
    %c0_i32_1 = arith.constant 0 : i32
    return %arg0, %0, %c0_i32, %c0_i32_0 : i32, i32, i32, i32
  }
  func.func @transform_2(%arg0: i32, %arg1: i32) -> (i32, i32, i32, i32) {
    %c2_i32 = arith.constant 2 : i32
    %0 = arith.addi %arg1, %c2_i32 : i32
    %c0_i32 = arith.constant 0 : i32
    %c0_i32_0 = arith.constant 0 : i32
    %c0_i32_1 = arith.constant 0 : i32
    return %arg0, %0, %c0_i32, %c0_i32_0 : i32, i32, i32, i32
  }
  func.func @transform_3(%arg0: i32, %arg1: i32) -> (i32, i32, i32) {
    %c0_i32 = arith.constant 0 : i32
    %c0_i32_0 = arith.constant 0 : i32
    %c0_i32_1 = arith.constant 0 : i32
    %c0_i32_2 = arith.constant 0 : i32
    return %c0_i32, %c0_i32_0, %c0_i32_1 : i32, i32, i32
  }
  func.func @transform_4(%arg0: i32, %arg1: i32) -> (i32, i32) {
    %c0_i32 = arith.constant 0 : i32
    %c0_i32_0 = arith.constant 0 : i32
    %c0_i32_1 = arith.constant 0 : i32
    return %c0_i32, %c0_i32_0 : i32, i32
  }
  func.func @transform_5(%arg0: i32, %arg1: i32) -> (i32, i32, i32, i32) {
    %c0_i32 = arith.constant 0 : i32
    %c0_i32_0 = arith.constant 0 : i32
    %c0_i32_1 = arith.constant 0 : i32
    return %arg0, %arg1, %c0_i32, %c0_i32_0 : i32, i32, i32, i32
  }
  func.func @transform_6(%arg0: i32, %arg1: i32) -> (i32, i32) {
    %c0_i32 = arith.constant 0 : i32
    %c0_i32_0 = arith.constant 0 : i32
    %c0_i32_1 = arith.constant 0 : i32
    return %c0_i32, %c0_i32_0 : i32, i32
  }
  func.func @transform_7(%arg0: i32, %arg1: i32) -> (i32, i32) {
    %c0_i32 = arith.constant 0 : i32
    %c0_i32_0 = arith.constant 0 : i32
    %c0_i32_1 = arith.constant 0 : i32
    return %c0_i32, %c0_i32_0 : i32, i32
  }
}

</mosaic_0001>

<llo_original>
// kernel: tpu_custom_call.1
$region0: #{tpu_custom_call.1}
  #allocation0 [shape = 'u32[]', space=smem, size = 0x4, offset = 0x4, fixed_abs, tag = 'smem constant byte address 0x4 - core index']
  #allocation1 [shape = 'u32[144,128]{1,0:T(1,128)}', space=vmem, size = 0x12000, scoped, tag = 'internal scratch']
  %s0 = inlined_call_operand.vmem [shape: bf16[2,18,18,128], index: 0, kind: input, shape index: {}]
  %s1 = inlined_call_operand.vmem [shape: bf16[2,18,18,128], index: 1, kind: input, shape index: {}]
  %s2 = inlined_call_operand.vmem [shape: bf16[2,18,18,128], index: 2, kind: input, shape index: {}]
  %s3 = inlined_call_operand.vmem [shape: bf16[9,128,128], index: 3, kind: input, shape index: {}]
  %s4 = inlined_call_operand.vmem [shape: f32[1,128], index: 4, kind: input, shape index: {}]
  %s5 = inlined_call_operand.hbm [shape: f32[2,16,16,128], index: 5, kind: output, shape index: {0}]
  %s6 = inlined_call_operand.hbm [shape: f32[1,128], index: 6, kind: output, shape index: {1}]
  %s7 = inlined_call_operand.hbm [shape: f32[1,128], index: 7, kind: output, shape index: {2}]
  %8 = xla_tuple %s5, %s6, %s7
  %s9 = sld [smem:[#allocation0]]
  $region73: #{tpu_custom_call.1} parent=0
    _
  %s11 = ssub.s32 1, %s9
  %s12 = scalar_select 0, %s11, %s9
  $region1: #{tpu_custom_call.1} parent=0
    #allocation2 [shape = 'u8[16384]{0}', space=vmem, size = 0x4000, scoped, tag = 'output window, operand 0']
    #allocation3 [shape = 's32[2]{0}', space=sflag, size = 0x8, scoped, tag = 'scoped memory for tpu_custom_call.1']
    #allocation4 [shape = 'u8[512]{0}', space=vmem, size = 0x400, scoped, tag = 'output window, operand 1, single buffered']
    #allocation5 [shape = 's32[1]{0}', space=sflag, size = 0x4, scoped, tag = 'scoped memory for tpu_custom_call.1']
    #allocation6 [shape = 'u8[512]{0}', space=vmem, size = 0x400, scoped, tag = 'output window, operand 2, single buffered']
    %13 = vsyncpa [#allocation3], 0
    %s14 = scalar_lea.sflag [#allocation3], 1
    %15 = vsyncpa %s14, 0
    %16 = vsyncpa [#allocation5], 0
    loop: start=0, step=1, limit=34
    $region2: #{tpu_custom_call.1} parent=1 // loop_pre_header
      _
    $region3: #{tpu_custom_call.1} parent=1 // loop_header
      %s18 = sphi 0, %s22
      %p19 = scmp.ge.s32.totalorder %s18, 34
      %s25 = sphi 0, %s37
      %s26 = sphi 0, %s33
      %s27 = sphi 0, %s25
      %s28 = sphi 0, %s26
      %s29 = sphi 0, %s27
      %s30 = sphi 0, %s28
      %s42 = sphi 0, %s44
      %s45 = sphi 0, %s42
      %s46 = sphi 0, %s45
      %s62 = sphi 0, %s46
      %s72 = sphi 0, %s74
      %s75 = sphi 0, %s72
      %s76 = sphi 0, %s75
      %s92 = sphi 0, %s76
      %s102 = sphi 0, %s104
      %s105 = sphi 0, %s102
      %s106 = sphi 0, %s105
      %s122 = sphi 0, %s106
      %s126 = sphi 0, %s126
      %s128 = sphi 0, %s126
      %s129 = sphi 0, %s128
      %s143 = sphi 0, %s129
      %s147 = sphi 0, %s147
      %s149 = sphi 0, %s147
      %s150 = sphi 0, %s149
      %s164 = sphi 0, %s150
      %s172 = sphi 0, %s174
      %s175 = sphi 0, %s172
      %s176 = sphi 0, %s175
      %s192 = sphi 0, %s176
      %s196 = sphi 0, %s196
      %s198 = sphi 0, %s196
      %s199 = sphi 0, %s198
      %s213 = sphi 0, %s199
      %s217 = sphi 0, %s217
      %s219 = sphi 0, %s217
      %s220 = sphi 0, %s219
      %s234 = sphi 0, %s220
    $region4: #{tpu_custom_call.1} parent=1 // loop_header_branch
      %21 = sbr.rel (%p19) target = $region8
    $region5: #{tpu_custom_call.1} parent=1 // loop_body
      %s23 = ssub.s32 %s18, 1
      %s24 = ssub.s32 %s18, 2
      %s31 = sadd.s32 1, %s26
      %p32 = scmp.ge.s32.totalorder %s31, 16
      %s33 = scalar_select %p32, 0, %s31
      %s34 = sadd.s32 1, %s25
      %s35 = scalar_select %p32, %s34, %s25
      %p36 = scmp.ge.s32.totalorder %s35, 2
      %s37 = scalar_select %p36, 0, %s35
      %s38 = ssub.s32 %s25, %s37
      %s39 = ssub.s32 %s26, %s33
      %s40 = sor.u32 %s38, %s39
      %p41 = scmp.eq.s32.totalorder %s40, 0
      %s43 = sadd.s32 %s42, 1
      %s44 = scalar_select %p41, %s42, %s43
      %p47 = pneg %p41
      %p48 = scmp.eq.s32.totalorder %s18, 31
      %p49 = por %p47, %p48
      %p50 = scmp.ne.s32.totalorder %s42, %s45
      %p51 = scmp.eq.s32.totalorder %s18, 0
      %p52 = por %p50, %p51
      %p53 = scmp.ne.s32.totalorder %s42, %s45
      %p54 = scmp.eq.s32.totalorder %s23, 31
      %p55 = por %p53, %p54
      %p56 = scmp.ne.s32.totalorder %s45, %s46
      %p57 = scmp.eq.s32.totalorder %s23, 0
      %p58 = por %p56, %p57
      %p59 = scmp.ne.s32.totalorder %s45, %s46
      %p60 = scmp.eq.s32.totalorder %s24, 31
      %p61 = por %p59, %p60
      %p63 = scmp.ne.s32.totalorder %s46, %s62
      %p64 = scmp.eq.s32.totalorder %s24, 0
      %p65 = por %p63, %p64
      %s66 = sadd.s32 %s26, 1
      %s67 = sadd.s32 %s33, 1
      %s68 = ssub.s32 %s25, %s37
      %s69 = ssub.s32 %s66, %s67
      %s70 = sor.u32 %s68, %s69
      %p71 = scmp.eq.s32.totalorder %s70, 0
      %s73 = sadd.s32 %s72, 1
      %s74 = scalar_select %p71, %s72, %s73
      %p77 = pneg %p71
      %p78 = scmp.eq.s32.totalorder %s18, 31
      %p79 = por %p77, %p78
      %p80 = scmp.ne.s32.totalorder %s72, %s75
      %p81 = scmp.eq.s32.totalorder %s18, 0
      %p82 = por %p80, %p81
      %p83 = scmp.ne.s32.totalorder %s72, %s75
      %p84 = scmp.eq.s32.totalorder %s23, 31
      %p85 = por %p83, %p84
      %p86 = scmp.ne.s32.totalorder %s75, %s76
      %p87 = scmp.eq.s32.totalorder %s23, 0
      %p88 = por %p86, %p87
      %p89 = scmp.ne.s32.totalorder %s75, %s76
      %p90 = scmp.eq.s32.totalorder %s24, 31
      %p91 = por %p89, %p90
      %p93 = scmp.ne.s32.totalorder %s76, %s92
      %p94 = scmp.eq.s32.totalorder %s24, 0
      %p95 = por %p93, %p94
      %s96 = sadd.s32 %s26, 2
      %s97 = sadd.s32 %s33, 2
      %s98 = ssub.s32 %s25, %s37
      %s99 = ssub.s32 %s96, %s97
      %s100 = sor.u32 %s98, %s99
      %p101 = scmp.eq.s32.totalorder %s100, 0
      %s103 = sadd.s32 %s102, 1
      %s104 = scalar_select %p101, %s102, %s103
      %p107 = pneg %p101
      %p108 = scmp.eq.s32.totalorder %s18, 31
      %p109 = por %p107, %p108
      %p110 = scmp.ne.s32.totalorder %s102, %s105
      %p111 = scmp.eq.s32.totalorder %s18, 0
      %p112 = por %p110, %p111
      %p113 = scmp.ne.s32.totalorder %s102, %s105
      %p114 = scmp.eq.s32.totalorder %s23, 31
      %p115 = por %p113, %p114
      %p116 = scmp.ne.s32.totalorder %s105, %s106
      %p117 = scmp.eq.s32.totalorder %s23, 0
      %p118 = por %p116, %p117
      %p119 = scmp.ne.s32.totalorder %s105, %s106
      %p120 = scmp.eq.s32.totalorder %s24, 31
      %p121 = por %p119, %p120
      %p123 = scmp.ne.s32.totalorder %s106, %s122
      %p124 = scmp.eq.s32.totalorder %s24, 0
      %p125 = por %p123, %p124
      %s127 = sadd.s32 %s126, 1
      %p130 = scmp.eq.s32.totalorder %s18, 31
      %p131 = scmp.ne.s32.totalorder %s126, %s128
      %p132 = scmp.eq.s32.totalorder %s18, 0
      %p133 = por %p131, %p132
      %p134 = scmp.ne.s32.totalorder %s126, %s128
      %p135 = scmp.eq.s32.totalorder %s23, 31
      %p136 = por %p134, %p135
      %p137 = scmp.ne.s32.totalorder %s128, %s129
      %p138 = scmp.eq.s32.totalorder %s23, 0
      %p139 = por %p137, %p138
      %p140 = scmp.ne.s32.totalorder %s128, %s129
      %p141 = scmp.eq.s32.totalorder %s24, 31
      %p142 = por %p140, %p141
      %p144 = scmp.ne.s32.totalorder %s129, %s143
      %p145 = scmp.eq.s32.totalorder %s24, 0
      %p146 = por %p144, %p145
      %s148 = sadd.s32 %s147, 1
      %p151 = scmp.eq.s32.totalorder %s18, 31
      %p152 = scmp.ne.s32.totalorder %s147, %s149
      %p153 = scmp.eq.s32.totalorder %s18, 0
      %p154 = por %p152, %p153
      %p155 = scmp.ne.s32.totalorder %s147, %s149
      %p156 = scmp.eq.s32.totalorder %s23, 31
      %p157 = por %p155, %p156
      %p158 = scmp.ne.s32.totalorder %s149, %s150
      %p159 = scmp.eq.s32.totalorder %s23, 0
      %p160 = por %p158, %p159
      %p161 = scmp.ne.s32.totalorder %s149, %s150
      %p162 = scmp.eq.s32.totalorder %s24, 31
      %p163 = por %p161, %p162
      %p165 = scmp.ne.s32.totalorder %s150, %s164
      %p166 = scmp.eq.s32.totalorder %s24, 0
      %p167 = por %p165, %p166
      %s168 = ssub.s32 %s25, %s37
      %s169 = ssub.s32 %s26, %s33
      %s170 = sor.u32 %s168, %s169
      %p171 = scmp.eq.s32.totalorder %s170, 0
      %s173 = sadd.s32 %s172, 1
      %s174 = scalar_select %p171, %s172, %s173
      %p177 = pneg %p171
      %p178 = scmp.eq.s32.totalorder %s18, 31
      %p179 = por %p177, %p178
      %p180 = scmp.ne.s32.totalorder %s172, %s175
      %p181 = scmp.eq.s32.totalorder %s18, 0
      %p182 = por %p180, %p181
      %p183 = scmp.ne.s32.totalorder %s172, %s175
      %p184 = scmp.eq.s32.totalorder %s23, 31
      %p185 = por %p183, %p184
      %p186 = scmp.ne.s32.totalorder %s175, %s176
      %p187 = scmp.eq.s32.totalorder %s23, 0
      %p188 = por %p186, %p187
      %p189 = scmp.ne.s32.totalorder %s175, %s176
      %p190 = scmp.eq.s32.totalorder %s24, 31
      %p191 = por %p189, %p190
      %p193 = scmp.ne.s32.totalorder %s176, %s192
      %p194 = scmp.eq.s32.totalorder %s24, 0
      %p195 = por %p193, %p194
      %s197 = sadd.s32 %s196, 1
      %p200 = scmp.eq.s32.totalorder %s18, 31
      %p201 = scmp.ne.s32.totalorder %s196, %s198
      %p202 = scmp.eq.s32.totalorder %s18, 0
      %p203 = por %p201, %p202
      %p204 = scmp.ne.s32.totalorder %s196, %s198
      %p205 = scmp.eq.s32.totalorder %s23, 31
      %p206 = por %p204, %p205
      %p207 = scmp.ne.s32.totalorder %s198, %s199
      %p208 = scmp.eq.s32.totalorder %s23, 0
      %p209 = por %p207, %p208
      %p210 = scmp.ne.s32.totalorder %s198, %s199
      %p211 = scmp.eq.s32.totalorder %s24, 31
      %p212 = por %p210, %p211
      %p214 = scmp.ne.s32.totalorder %s199, %s213
      %p215 = scmp.eq.s32.totalorder %s24, 0
      %p216 = por %p214, %p215
      %s218 = sadd.s32 %s217, 1
      %p221 = scmp.eq.s32.totalorder %s18, 31
      %p222 = scmp.ne.s32.totalorder %s217, %s219
      %p223 = scmp.eq.s32.totalorder %s18, 0
      %p224 = por %p222, %p223
      %p225 = scmp.ne.s32.totalorder %s217, %s219
      %p226 = scmp.eq.s32.totalorder %s23, 31
      %p227 = por %p225, %p226
      %p228 = scmp.ne.s32.totalorder %s219, %s220
      %p229 = scmp.eq.s32.totalorder %s23, 0
      %p230 = por %p228, %p229
      %p231 = scmp.ne.s32.totalorder %s219, %s220
      %p232 = scmp.eq.s32.totalorder %s24, 31
      %p233 = por %p231, %p232
      %p235 = scmp.ne.s32.totalorder %s220, %s234
      %p236 = scmp.eq.s32.totalorder %s24, 0
      %p237 = por %p235, %p236
      %p238 = scmp.le.s32.totalorder 1, %s18
      %p239 = scmp.lt.s32.totalorder %s18, 33
      %p240 = pnand %p238, %p239
      %p241 = pneg %p240
      // Predicated region
      $region9: #{tpu_custom_call.1} parent=5 // pred_check
        _
      $region10: #{tpu_custom_call.1} parent=5 // pred_check_branch
        %243 = sbr.rel (%p240) target = $region12
      $region11: #{tpu_custom_call.1} parent=5 // pred_region
        %s244 = ssub.s32 %s18, 1
        // Predicated region
        $region13: #{tpu_custom_call.1} parent=11 // pred_check
          %p245 = pneg %p139
        $region14: #{tpu_custom_call.1} parent=11 // pred_check_branch
          %247 = sbr.rel (%p245) target = $region16
        $region15: #{tpu_custom_call.1} parent=11 // pred_region
          _
        $region16: #{tpu_custom_call.1} parent=11 // pred_fallthru
          _
        // Predicated region
        $region17: #{tpu_custom_call.1} parent=11 // pred_check
          %p248 = pneg %p160
        $region18: #{tpu_custom_call.1} parent=11 // pred_check_branch
          %250 = sbr.rel (%p248) target = $region20
        $region19: #{tpu_custom_call.1} parent=11 // pred_region
          _
        $region20: #{tpu_custom_call.1} parent=11 // pred_fallthru
          _
      $region12: #{tpu_custom_call.1} parent=5 // pred_fallthru
        _
      %p251 = scmp.lt.s32.totalorder %s18, 32
      // Predicated region
      $region21: #{tpu_custom_call.1} parent=5 // pred_check
        %p252 = pneg %p251
      $region22: #{tpu_custom_call.1} parent=5 // pred_check_branch
        %254 = sbr.rel (%p252) target = $region24
      $region23: #{tpu_custom_call.1} parent=5 // pred_region
        // Predicated region
        $region25: #{tpu_custom_call.1} parent=23 // pred_check
          %p255 = pneg %p52
        $region26: #{tpu_custom_call.1} parent=23 // pred_check_branch
          %257 = sbr.rel (%p255) target = $region28
        $region27: #{tpu_custom_call.1} parent=23 // pred_region
          %p258 = scmp.lt.s32.totalorder %s25, 1
          %s259 = scalar_select %p258, %s25, 1
          %p260 = scmp.lt.s32.totalorder %s26, 17
          %s261 = scalar_select %p260, %s26, 17
          %s262 = smul.addr %s261, 3
          %s263 = smul.addr %s259, 54
          %s264 = sadd.s32 %s262, %s263
          %s265 = smul.addr %s264, 4
          %s266 = scalar_lea.vmem %s0, %s265
        $region28: #{tpu_custom_call.1} parent=23 // pred_fallthru
          _
        // Predicated region
        $region29: #{tpu_custom_call.1} parent=23 // pred_check
          %p267 = pneg %p82
        $region30: #{tpu_custom_call.1} parent=23 // pred_check_branch
          %269 = sbr.rel (%p267) target = $region32
        $region31: #{tpu_custom_call.1} parent=23 // pred_region
          %s270 = sadd.s32 %s26, 1
          %p271 = scmp.lt.s32.totalorder %s25, 1
          %s272 = scalar_select %p271, %s25, 1
          %p273 = scmp.lt.s32.totalorder %s270, 17
          %s274 = scalar_select %p273, %s270, 17
          %s275 = smul.addr %s274, 3
          %s276 = smul.addr %s272, 54
          %s277 = sadd.s32 %s275, %s276
          %s278 = smul.addr %s277, 4
          %s279 = scalar_lea.vmem %s1, %s278
          %s280 = sadd.s32 %s26, 1
        $region32: #{tpu_custom_call.1} parent=23 // pred_fallthru
          _
        // Predicated region
        $region33: #{tpu_custom_call.1} parent=23 // pred_check
          %p281 = pneg %p112
        $region34: #{tpu_custom_call.1} parent=23 // pred_check_branch
          %283 = sbr.rel (%p281) target = $region36
        $region35: #{tpu_custom_call.1} parent=23 // pred_region
          %s284 = sadd.s32 %s26, 2
          %p285 = scmp.lt.s32.totalorder %s25, 1
          %s286 = scalar_select %p285, %s25, 1
          %p287 = scmp.lt.s32.totalorder %s284, 17
          %s288 = scalar_select %p287, %s284, 17
          %s289 = smul.addr %s288, 3
          %s290 = smul.addr %s286, 54
          %s291 = sadd.s32 %s289, %s290
          %s292 = smul.addr %s291, 4
          %s293 = scalar_lea.vmem %s2, %s292
          %s294 = sadd.s32 %s26, 2
        $region36: #{tpu_custom_call.1} parent=23 // pred_fallthru
          _
      $region24: #{tpu_custom_call.1} parent=5 // pred_fallthru
        _
      %p295 = scmp.le.s32.totalorder 1, %s18
      %p296 = scmp.lt.s32.totalorder %s18, 33
      %p297 = pnand %p295, %p296
      %p298 = pneg %p297
      // Predicated region
      $region37: #{tpu_custom_call.1} parent=5 // pred_check
        _
      $region38: #{tpu_custom_call.1} parent=5 // pred_check_branch
        %300 = sbr.rel (%p297) target = $region40
      $region39: #{tpu_custom_call.1} parent=5 // pred_region
        %s301 = ssub.s32 %s18, 1
        %p302 = scmp.lt.s32.totalorder %s27, 1
        %s303 = scalar_select %p302, %s27, 1
        %p304 = scmp.lt.s32.totalorder %s28, 17
        %s305 = scalar_select %p304, %s28, 17
        %s306 = smul.addr %s305, 3
        %s307 = smul.addr %s303, 54
        %s308 = sadd.s32 %s306, %s307
        %s309 = smul.addr %s308, 4
        %s310 = scalar_lea.vmem %s0, %s309
        %p311 = pneg %p58
        %p312 = pneg %p55
        %s313 = sadd.s32 %s28, 1
        %p314 = scmp.lt.s32.totalorder %s27, 1
        %s315 = scalar_select %p314, %s27, 1
        %p316 = scmp.lt.s32.totalorder %s313, 17
        %s317 = scalar_select %p316, %s313, 17
        %s318 = smul.addr %s317, 3
        %s319 = smul.addr %s315, 54
        %s320 = sadd.s32 %s318, %s319
        %s321 = smul.addr %s320, 4
        %s322 = scalar_lea.vmem %s1, %s321
        %p323 = pneg %p88
        %p324 = pneg %p85
        %s325 = sadd.s32 %s28, 2
        %p326 = scmp.lt.s32.totalorder %s27, 1
        %s327 = scalar_select %p326, %s27, 1
        %p328 = scmp.lt.s32.totalorder %s325, 17
        %s329 = scalar_select %p328, %s325, 17
        %s330 = smul.addr %s329, 3
        %s331 = smul.addr %s327, 54
        %s332 = sadd.s32 %s330, %s331
        %s333 = smul.addr %s332, 4
        %s334 = scalar_lea.vmem %s2, %s333
        %p335 = pneg %p118
        %p336 = pneg %p115
        %p337 = pneg %p139
        %p338 = pneg %p136
        %p339 = pneg %p160
        %p340 = pneg %p157
        %p341 = pneg %p188
        %p342 = pneg %p185
        %s343 = sand.u32 %s175, 1
        %s344 = scalar_lea.sflag [#allocation3], %s343
        %s345 = sand.u32 %s175, 1
        %s346 = smul.addr %s345, 16
        %s347 = scalar_lea.vmem [#allocation2], %s346
        %p348 = pneg %p209
        %p349 = pneg %p206
        %p350 = pneg %p230
        %p351 = pneg %p227
        %p352 = scmp.lt.s32.totalorder %s27, 1
        %s353 = scalar_select %p352, %s27, 1
        %p354 = scmp.lt.s32.totalorder %s28, 17
        %s355 = scalar_select %p354, %s28, 17
        %s356 = smul.addr %s355, 3
        %s357 = smul.addr %s353, 54
        %s358 = sadd.s32 %s356, %s357
        %s359 = smul.addr %s358, 4
        %s360 = scalar_lea.vmem %s0, %s359
        %s361 = sadd.s32 %s28, 1
        %p362 = scmp.lt.s32.totalorder %s27, 1
        %s363 = scalar_select %p362, %s27, 1
        %p364 = scmp.lt.s32.totalorder %s361, 17
        %s365 = scalar_select %p364, %s361, 17
        %s366 = smul.addr %s365, 3
        %s367 = smul.addr %s363, 54
        %s368 = sadd.s32 %s366, %s367
        %s369 = smul.addr %s368, 4
        %s370 = scalar_lea.vmem %s1, %s369
        %s371 = sadd.s32 %s28, 1
        %s372 = sadd.s32 %s28, 2
        %p373 = scmp.lt.s32.totalorder %s27, 1
        %s374 = scalar_select %p373, %s27, 1
        %p375 = scmp.lt.s32.totalorder %s372, 17
        %s376 = scalar_select %p375, %s372, 17
        %s377 = smul.addr %s376, 3
        %s378 = smul.addr %s374, 54
        %s379 = sadd.s32 %s377, %s378
        %s380 = smul.addr %s379, 4
        %s381 = scalar_lea.vmem %s2, %s380
        %s382 = sadd.s32 %s28, 2
        %v384 = vld [vmem:[%s360] sm:$0xf]
        %v385 = vld [vmem:[%s360 + $0x4] sm:$0xf]
        %v386 = vld [vmem:[%s360 + $0x8] sm:$0x1]
        %v387 = vld [vmem:[%s3] sm:$0xf]
        %v388 = vld [vmem:[%s3 + $0x4] sm:$0xf]
        %v389 = vld [vmem:[%s3 + $0x8] sm:$0xf]
        %v390 = vld [vmem:[%s3 + $0xc] sm:$0xf]
        %v391 = vld [vmem:[%s3 + $0x10] sm:$0xf]
        %v392 = vld [vmem:[%s3 + $0x14] sm:$0xf]
        %v393 = vld [vmem:[%s3 + $0x18] sm:$0xf]
        %v394 = vld [vmem:[%s3 + $0x1c] sm:$0xf]
        %v395 = vld [vmem:[%s3 + $0x20] sm:$0xf]
        %v396 = vld [vmem:[%s3 + $0x24] sm:$0xf]
        %v397 = vld [vmem:[%s3 + $0x28] sm:$0xf]
        %v398 = vld [vmem:[%s3 + $0x2c] sm:$0xf]
        %v399 = vld [vmem:[%s3 + $0x30] sm:$0xf]
        %v400 = vld [vmem:[%s3 + $0x34] sm:$0xf]
        %v401 = vld [vmem:[%s3 + $0x38] sm:$0xf]
        %v402 = vld [vmem:[%s3 + $0x3c] sm:$0xf]
        %s403 = scalar_lea.vmem %s3, 64
        %v404 = vld [vmem:[%s403] sm:$0xf]
        %v405 = vld [vmem:[%s403 + $0x4] sm:$0xf]
        %v406 = vld [vmem:[%s403 + $0x8] sm:$0xf]
        %v407 = vld [vmem:[%s403 + $0xc] sm:$0xf]
        %v408 = vld [vmem:[%s403 + $0x10] sm:$0xf]
        %v409 = vld [vmem:[%s403 + $0x14] sm:$0xf]
        %v410 = vld [vmem:[%s403 + $0x18] sm:$0xf]
        %v411 = vld [vmem:[%s403 + $0x1c] sm:$0xf]
        %v412 = vld [vmem:[%s403 + $0x20] sm:$0xf]
        %v413 = vld [vmem:[%s403 + $0x24] sm:$0xf]
        %v414 = vld [vmem:[%s403 + $0x28] sm:$0xf]
        %v415 = vld [vmem:[%s403 + $0x2c] sm:$0xf]
        %v416 = vld [vmem:[%s403 + $0x30] sm:$0xf]
        %v417 = vld [vmem:[%s403 + $0x34] sm:$0xf]
        %v418 = vld [vmem:[%s403 + $0x38] sm:$0xf]
        %v419 = vld [vmem:[%s403 + $0x3c] sm:$0xf]
        %v423 = vunpack.c.l.b16 %v384
        %v424 = vunpack.c.l.b16 %v385
        %v425 = vunpack.c.l.b16 %v386
        %v426 = vpack.c.b16 %v424, %v423
        %v427 = vpack.c.b16 %v425, %v425
        %vm428 = vsmask.f32 7424
        %v430 = vshrl.u32 %v426, 16
        %v432 = vshll.u32 %v426, 16
        %v434 = vrot.slane %v432, 1
        %v435 = vor.u32 %v430, %v434
        %v437 = vshll.u32 %v427, 16
        %v439 = vrot.slane %v437, 1
        %v440 = vsel %vm428, %v435, %v439
        %v458 = vunpack.c.l.b16 %v404
        %v459 = vunpack.c.l.b16 %v405
        %v460 = vunpack.c.l.b16 %v406
        %v461 = vunpack.c.l.b16 %v407
        %v462 = vunpack.c.l.b16 %v408
        %v463 = vunpack.c.l.b16 %v409
        %v464 = vunpack.c.l.b16 %v410
        %v465 = vunpack.c.l.b16 %v411
        %v466 = vunpack.c.l.b16 %v412
        %v467 = vunpack.c.l.b16 %v413
        %v468 = vunpack.c.l.b16 %v414
        %v469 = vunpack.c.l.b16 %v415
        %v470 = vunpack.c.l.b16 %v416
        %v471 = vunpack.c.l.b16 %v417
        %v472 = vunpack.c.l.b16 %v418
        %v473 = vunpack.c.l.b16 %v419
        %v474 = vpack.c.b16 %v459, %v458
        %v475 = vpack.c.b16 %v461, %v460
        %v476 = vpack.c.b16 %v463, %v462
        %v477 = vpack.c.b16 %v465, %v464
        %v478 = vpack.c.b16 %v467, %v466
        %v479 = vpack.c.b16 %v469, %v468
        %v480 = vpack.c.b16 %v471, %v470
        %v481 = vpack.c.b16 %v473, %v472
        %490 = vmatprep.subr.bf16.mxu0 0
        %491 = vmatpush1.bf16.msra.mxu0 %v481
        %492 = vmatprep.subr.bf16.mxu0 0
        %493 = vmatpush1.bf16.msra.mxu0 %v480
        %494 = vmatprep.subr.bf16.mxu0 0
        %495 = vmatpush1.bf16.msra.mxu0 %v479
        %496 = vmatprep.subr.bf16.mxu0 0
        %497 = vmatpush1.bf16.msra.mxu0 %v478
        %498 = vmatprep.subr.bf16.mxu0 0
        %499 = vmatpush1.bf16.msra.mxu0 %v477
        %500 = vmatprep.subr.bf16.mxu0 0
        %501 = vmatpush1.bf16.msra.mxu0 %v476
        %502 = vmatprep.subr.bf16.mxu0 0
        %503 = vmatpush1.bf16.msra.mxu0 %v475
        %504 = vmatprep.subr.bf16.mxu0 0
        %505 = vmatpush1.bf16.msra.mxu0 %v474
        %506 = vmatprep.subr.bf16.mxu0 0
        %507 = vmatpush2.bf16.msra.mxu0 0
        %508 = vmatprep.subr.bf16.mxu0 0
        %509 = vmatpush2.bf16.msra.mxu0 0
        %510 = vmatprep.subr.bf16.mxu0 0
        %511 = vmatpush2.bf16.msra.mxu0 0
        %512 = vmatprep.subr.bf16.mxu0 0
        %513 = vmatpush2.bf16.msra.mxu0 0
        %514 = vmatprep.subr.bf16.mxu0 0
        %515 = vmatpush2.bf16.msra.mxu0 0
        %516 = vmatprep.subr.bf16.mxu0 0
        %517 = vmatpush2.bf16.msra.mxu0 0
        %518 = vmatprep.subr.bf16.mxu0 0
        %519 = vmatpush2.bf16.msra.mxu0 0
        %520 = vmatprep.subr.bf16.mxu0 0
        %521 = vmatpush2.bf16.msra.mxu0 0
        %522 = vmatprep.mubr.bf16.mxu0 0
        %523 = vmatmul.mubr.bf16.gmra.mxu0 %v440
        %v524 = vpop.f32.mrf.mxu0
        %v525 = vadd.f32 0.0, %v524
        %v526 = vpop.f32.mrf.mxu0
        %v527 = vpop.f32.mrf.mxu0
        %v528 = vadd.f32 0.0, %v527
        %v529 = vpop.f32.mrf.mxu0
        %530 = vdwg.mxu0
        %v548 = vunpack.c.l.b16 %v387
        %v549 = vunpack.c.l.b16 %v388
        %v550 = vunpack.c.l.b16 %v389
        %v551 = vunpack.c.l.b16 %v390
        %v552 = vunpack.c.l.b16 %v391
        %v553 = vunpack.c.l.b16 %v392
        %v554 = vunpack.c.l.b16 %v393
        %v555 = vunpack.c.l.b16 %v394
        %v556 = vunpack.c.l.b16 %v395
        %v557 = vunpack.c.l.b16 %v396
        %v558 = vunpack.c.l.b16 %v397
        %v559 = vunpack.c.l.b16 %v398
        %v560 = vunpack.c.l.b16 %v399
        %v561 = vunpack.c.l.b16 %v400
        %v562 = vunpack.c.l.b16 %v401
        %v563 = vunpack.c.l.b16 %v402
        %v564 = vpack.c.b16 %v549, %v548
        %v565 = vpack.c.b16 %v551, %v550
        %v566 = vpack.c.b16 %v553, %v552
        %v567 = vpack.c.b16 %v555, %v554
        %v568 = vpack.c.b16 %v557, %v556
        %v569 = vpack.c.b16 %v559, %v558
        %v570 = vpack.c.b16 %v561, %v560
        %v571 = vpack.c.b16 %v563, %v562
        %580 = vmatprep.subr.bf16.mxu0 0
        %581 = vmatpush1.bf16.msra.mxu0 %v571
        %582 = vmatprep.subr.bf16.mxu0 0
        %583 = vmatpush1.bf16.msra.mxu0 %v570
        %584 = vmatprep.subr.bf16.mxu0 0
        %585 = vmatpush1.bf16.msra.mxu0 %v569
        %586 = vmatprep.subr.bf16.mxu0 0
        %587 = vmatpush1.bf16.msra.mxu0 %v568
        %588 = vmatprep.subr.bf16.mxu0 0
        %589 = vmatpush1.bf16.msra.mxu0 %v567
        %590 = vmatprep.subr.bf16.mxu0 0
        %591 = vmatpush1.bf16.msra.mxu0 %v566
        %592 = vmatprep.subr.bf16.mxu0 0
        %593 = vmatpush1.bf16.msra.mxu0 %v565
        %594 = vmatprep.subr.bf16.mxu0 0
        %595 = vmatpush1.bf16.msra.mxu0 %v564
        %596 = vmatprep.subr.bf16.mxu0 0
        %597 = vmatpush2.bf16.msra.mxu0 0
        %598 = vmatprep.subr.bf16.mxu0 0
        %599 = vmatpush2.bf16.msra.mxu0 0
        %600 = vmatprep.subr.bf16.mxu0 0
        %601 = vmatpush2.bf16.msra.mxu0 0
        %602 = vmatprep.subr.bf16.mxu0 0
        %603 = vmatpush2.bf16.msra.mxu0 0
        %604 = vmatprep.subr.bf16.mxu0 0
        %605 = vmatpush2.bf16.msra.mxu0 0
        %606 = vmatprep.subr.bf16.mxu0 0
        %607 = vmatpush2.bf16.msra.mxu0 0
        %608 = vmatprep.subr.bf16.mxu0 0
        %609 = vmatpush2.bf16.msra.mxu0 0
        %610 = vmatprep.subr.bf16.mxu0 0
        %611 = vmatpush2.bf16.msra.mxu0 0
        %612 = vmatprep.mubr.bf16.mxu0 0
        %613 = vmatmul.mubr.bf16.gmra.mxu0 %v426
        %v614 = vpop.f32.mrf.mxu0
        %v615 = vadd.f32 %v525, %v614
        %v616 = vpop.f32.mrf.mxu0
        %v617 = vpop.f32.mrf.mxu0
        %v618 = vadd.f32 %v528, %v617
        %v619 = vpop.f32.mrf.mxu0
        %620 = vdwg.mxu0
        %s621 = scalar_lea.vmem %s3, 128
        %v622 = vld [vmem:[%s621] sm:$0xf]
        %v623 = vld [vmem:[%s621 + $0x4] sm:$0xf]
        %v624 = vld [vmem:[%s621 + $0x8] sm:$0xf]
        %v625 = vld [vmem:[%s621 + $0xc] sm:$0xf]
        %v626 = vld [vmem:[%s621 + $0x10] sm:$0xf]
        %v627 = vld [vmem:[%s621 + $0x14] sm:$0xf]
        %v628 = vld [vmem:[%s621 + $0x18] sm:$0xf]
        %v629 = vld [vmem:[%s621 + $0x1c] sm:$0xf]
        %v630 = vld [vmem:[%s621 + $0x20] sm:$0xf]
        %v631 = vld [vmem:[%s621 + $0x24] sm:$0xf]
        %v632 = vld [vmem:[%s621 + $0x28] sm:$0xf]
        %v633 = vld [vmem:[%s621 + $0x2c] sm:$0xf]
        %v634 = vld [vmem:[%s621 + $0x30] sm:$0xf]
        %v635 = vld [vmem:[%s621 + $0x34] sm:$0xf]
        %v636 = vld [vmem:[%s621 + $0x38] sm:$0xf]
        %v637 = vld [vmem:[%s621 + $0x3c] sm:$0xf]
        %vm638 = vcmask 1046528
        %v639 = vrot.slane %v426, 1
        %v640 = vrot.slane %v427, 1
        %v641 = vsel %vm638, %v639, %v640
        %v659 = vunpack.c.l.b16 %v622
        %v660 = vunpack.c.l.b16 %v623
        %v661 = vunpack.c.l.b16 %v624
        %v662 = vunpack.c.l.b16 %v625
        %v663 = vunpack.c.l.b16 %v626
        %v664 = vunpack.c.l.b16 %v627
        %v665 = vunpack.c.l.b16 %v628
        %v666 = vunpack.c.l.b16 %v629
        %v667 = vunpack.c.l.b16 %v630
        %v668 = vunpack.c.l.b16 %v631
        %v669 = vunpack.c.l.b16 %v632
        %v670 = vunpack.c.l.b16 %v633
        %v671 = vunpack.c.l.b16 %v634
        %v672 = vunpack.c.l.b16 %v635
        %v673 = vunpack.c.l.b16 %v636
        %v674 = vunpack.c.l.b16 %v637
        %v675 = vpack.c.b16 %v660, %v659
        %v676 = vpack.c.b16 %v662, %v661
        %v677 = vpack.c.b16 %v664, %v663
        %v678 = vpack.c.b16 %v666, %v665
        %v679 = vpack.c.b16 %v668, %v667
        %v680 = vpack.c.b16 %v670, %v669
        %v681 = vpack.c.b16 %v672, %v671
        %v682 = vpack.c.b16 %v674, %v673
        %691 = vmatprep.subr.bf16.mxu0 0
        %692 = vmatpush1.bf16.msra.mxu0 %v682
        %693 = vmatprep.subr.bf16.mxu0 0
        %694 = vmatpush1.bf16.msra.mxu0 %v681
        %695 = vmatprep.subr.bf16.mxu0 0
        %696 = vmatpush1.bf16.msra.mxu0 %v680
        %697 = vmatprep.subr.bf16.mxu0 0
        %698 = vmatpush1.bf16.msra.mxu0 %v679
        %699 = vmatprep.subr.bf16.mxu0 0
        %700 = vmatpush1.bf16.msra.mxu0 %v678
        %701 = vmatprep.subr.bf16.mxu0 0
        %702 = vmatpush1.bf16.msra.mxu0 %v677
        %703 = vmatprep.subr.bf16.mxu0 0
        %704 = vmatpush1.bf16.msra.mxu0 %v676
        %705 = vmatprep.subr.bf16.mxu0 0
        %706 = vmatpush1.bf16.msra.mxu0 %v675
        %707 = vmatprep.subr.bf16.mxu0 0
        %708 = vmatpush2.bf16.msra.mxu0 0
        %709 = vmatprep.subr.bf16.mxu0 0
        %710 = vmatpush2.bf16.msra.mxu0 0
        %711 = vmatprep.subr.bf16.mxu0 0
        %712 = vmatpush2.bf16.msra.mxu0 0
        %713 = vmatprep.subr.bf16.mxu0 0
        %714 = vmatpush2.bf16.msra.mxu0 0
        %715 = vmatprep.subr.bf16.mxu0 0
        %716 = vmatpush2.bf16.msra.mxu0 0
        %717 = vmatprep.subr.bf16.mxu0 0
        %718 = vmatpush2.bf16.msra.mxu0 0
        %719 = vmatprep.subr.bf16.mxu0 0
        %720 = vmatpush2.bf16.msra.mxu0 0
        %721 = vmatprep.subr.bf16.mxu0 0
        %722 = vmatpush2.bf16.msra.mxu0 0
        %723 = vmatprep.mubr.bf16.mxu0 0
        %724 = vmatmul.mubr.bf16.gmra.mxu0 %v641
        %v725 = vpop.f32.mrf.mxu0
        %v726 = vadd.f32 0.0, %v725
        %v727 = vpop.f32.mrf.mxu0
        %v728 = vpop.f32.mrf.mxu0
        %v729 = vadd.f32 0.0, %v728
        %v730 = vpop.f32.mrf.mxu0
        %731 = vdwg.mxu0
        %v732 = vadd.f32 %v615, %v726
        %v733 = vadd.f32 %v618, %v729
        %v734 = vld [vmem:[%s370] sm:$0xf]
        %v735 = vld [vmem:[%s370 + $0x4] sm:$0xf]
        %v736 = vld [vmem:[%s370 + $0x8] sm:$0x1]
        %s737 = scalar_lea.vmem %s3, 192
        %v738 = vld [vmem:[%s737] sm:$0xf]
        %v739 = vld [vmem:[%s737 + $0x4] sm:$0xf]
        %v740 = vld [vmem:[%s737 + $0x8] sm:$0xf]
        %v741 = vld [vmem:[%s737 + $0xc] sm:$0xf]
        %v742 = vld [vmem:[%s737 + $0x10] sm:$0xf]
        %v743 = vld [vmem:[%s737 + $0x14] sm:$0xf]
        %v744 = vld [vmem:[%s737 + $0x18] sm:$0xf]
        %v745 = vld [vmem:[%s737 + $0x1c] sm:$0xf]
        %v746 = vld [vmem:[%s737 + $0x20] sm:$0xf]
        %v747 = vld [vmem:[%s737 + $0x24] sm:$0xf]
        %v748 = vld [vmem:[%s737 + $0x28] sm:$0xf]
        %v749 = vld [vmem:[%s737 + $0x2c] sm:$0xf]
        %v750 = vld [vmem:[%s737 + $0x30] sm:$0xf]
        %v751 = vld [vmem:[%s737 + $0x34] sm:$0xf]
        %v752 = vld [vmem:[%s737 + $0x38] sm:$0xf]
        %v753 = vld [vmem:[%s737 + $0x3c] sm:$0xf]
        %v756 = vunpack.c.l.b16 %v734
        %v757 = vunpack.c.l.b16 %v735
        %v758 = vpack.c.b16 %v757, %v756
        %v776 = vunpack.c.l.b16 %v738
        %v777 = vunpack.c.l.b16 %v739
        %v778 = vunpack.c.l.b16 %v740
        %v779 = vunpack.c.l.b16 %v741
        %v780 = vunpack.c.l.b16 %v742
        %v781 = vunpack.c.l.b16 %v743
        %v782 = vunpack.c.l.b16 %v744
        %v783 = vunpack.c.l.b16 %v745
        %v784 = vunpack.c.l.b16 %v746
        %v785 = vunpack.c.l.b16 %v747
        %v786 = vunpack.c.l.b16 %v748
        %v787 = vunpack.c.l.b16 %v749
        %v788 = vunpack.c.l.b16 %v750
        %v789 = vunpack.c.l.b16 %v751
        %v790 = vunpack.c.l.b16 %v752
        %v791 = vunpack.c.l.b16 %v753
        %v792 = vpack.c.b16 %v777, %v776
        %v793 = vpack.c.b16 %v779, %v778
        %v794 = vpack.c.b16 %v781, %v780
        %v795 = vpack.c.b16 %v783, %v782
        %v796 = vpack.c.b16 %v785, %v784
        %v797 = vpack.c.b16 %v787, %v786
        %v798 = vpack.c.b16 %v789, %v788
        %v799 = vpack.c.b16 %v791, %v790
        %808 = vmatprep.subr.bf16.mxu0 0
        %809 = vmatpush1.bf16.msra.mxu0 %v799
        %810 = vmatprep.subr.bf16.mxu0 0
        %811 = vmatpush1.bf16.msra.mxu0 %v798
        %812 = vmatprep.subr.bf16.mxu0 0
        %813 = vmatpush1.bf16.msra.mxu0 %v797
        %814 = vmatprep.subr.bf16.mxu0 0
        %815 = vmatpush1.bf16.msra.mxu0 %v796
        %816 = vmatprep.subr.bf16.mxu0 0
        %817 = vmatpush1.bf16.msra.mxu0 %v795
        %818 = vmatprep.subr.bf16.mxu0 0
        %819 = vmatpush1.bf16.msra.mxu0 %v794
        %820 = vmatprep.subr.bf16.mxu0 0
        %821 = vmatpush1.bf16.msra.mxu0 %v793
        %822 = vmatprep.subr.bf16.mxu0 0
        %823 = vmatpush1.bf16.msra.mxu0 %v792
        %824 = vmatprep.subr.bf16.mxu0 0
        %825 = vmatpush2.bf16.msra.mxu0 0
        %826 = vmatprep.subr.bf16.mxu0 0
        %827 = vmatpush2.bf16.msra.mxu0 0
        %828 = vmatprep.subr.bf16.mxu0 0
        %829 = vmatpush2.bf16.msra.mxu0 0
        %830 = vmatprep.subr.bf16.mxu0 0
        %831 = vmatpush2.bf16.msra.mxu0 0
        %832 = vmatprep.subr.bf16.mxu0 0
        %833 = vmatpush2.bf16.msra.mxu0 0
        %834 = vmatprep.subr.bf16.mxu0 0
        %835 = vmatpush2.bf16.msra.mxu0 0
        %836 = vmatprep.subr.bf16.mxu0 0
        %837 = vmatpush2.bf16.msra.mxu0 0
        %838 = vmatprep.subr.bf16.mxu0 0
        %839 = vmatpush2.bf16.msra.mxu0 0
        %840 = vmatprep.mubr.bf16.mxu0 0
        %841 = vmatmul.mubr.bf16.gmra.mxu0 %v758
        %v842 = vpop.f32.mrf.mxu0
        %v843 = vadd.f32 0.0, %v842
        %v844 = vpop.f32.mrf.mxu0
        %v845 = vpop.f32.mrf.mxu0
        %v846 = vadd.f32 0.0, %v845
        %v847 = vpop.f32.mrf.mxu0
        %848 = vdwg.mxu0
        %v849 = vadd.f32 %v732, %v843
        %v850 = vadd.f32 %v733, %v846
        %s851 = scalar_lea.vmem %s3, 256
        %v852 = vld [vmem:[%s851] sm:$0xf]
        %v853 = vld [vmem:[%s851 + $0x4] sm:$0xf]
        %v854 = vld [vmem:[%s851 + $0x8] sm:$0xf]
        %v855 = vld [vmem:[%s851 + $0xc] sm:$0xf]
        %v856 = vld [vmem:[%s851 + $0x10] sm:$0xf]
        %v857 = vld [vmem:[%s851 + $0x14] sm:$0xf]
        %v858 = vld [vmem:[%s851 + $0x18] sm:$0xf]
        %v859 = vld [vmem:[%s851 + $0x1c] sm:$0xf]
        %v860 = vld [vmem:[%s851 + $0x20] sm:$0xf]
        %v861 = vld [vmem:[%s851 + $0x24] sm:$0xf]
        %v862 = vld [vmem:[%s851 + $0x28] sm:$0xf]
        %v863 = vld [vmem:[%s851 + $0x2c] sm:$0xf]
        %v864 = vld [vmem:[%s851 + $0x30] sm:$0xf]
        %v865 = vld [vmem:[%s851 + $0x34] sm:$0xf]
        %v866 = vld [vmem:[%s851 + $0x38] sm:$0xf]
        %v867 = vld [vmem:[%s851 + $0x3c] sm:$0xf]
        %v869 = vunpack.c.l.b16 %v736
        %v870 = vpack.c.b16 %v869, %v869
        %v872 = vshrl.u32 %v758, 16
        %v874 = vshll.u32 %v758, 16
        %v876 = vrot.slane %v874, 1
        %v877 = vor.u32 %v872, %v876
        %v879 = vshll.u32 %v870, 16
        %v881 = vrot.slane %v879, 1
        %v882 = vsel %vm428, %v877, %v881
        %v900 = vunpack.c.l.b16 %v852
        %v901 = vunpack.c.l.b16 %v853
        %v902 = vunpack.c.l.b16 %v854
        %v903 = vunpack.c.l.b16 %v855
        %v904 = vunpack.c.l.b16 %v856
        %v905 = vunpack.c.l.b16 %v857
        %v906 = vunpack.c.l.b16 %v858
        %v907 = vunpack.c.l.b16 %v859
        %v908 = vunpack.c.l.b16 %v860
        %v909 = vunpack.c.l.b16 %v861
        %v910 = vunpack.c.l.b16 %v862
        %v911 = vunpack.c.l.b16 %v863
        %v912 = vunpack.c.l.b16 %v864
        %v913 = vunpack.c.l.b16 %v865
        %v914 = vunpack.c.l.b16 %v866
        %v915 = vunpack.c.l.b16 %v867
        %v916 = vpack.c.b16 %v901, %v900
        %v917 = vpack.c.b16 %v903, %v902
        %v918 = vpack.c.b16 %v905, %v904
        %v919 = vpack.c.b16 %v907, %v906
        %v920 = vpack.c.b16 %v909, %v908
        %v921 = vpack.c.b16 %v911, %v910
        %v922 = vpack.c.b16 %v913, %v912
        %v923 = vpack.c.b16 %v915, %v914
        %932 = vmatprep.subr.bf16.mxu0 0
        %933 = vmatpush1.bf16.msra.mxu0 %v923
        %934 = vmatprep.subr.bf16.mxu0 0
        %935 = vmatpush1.bf16.msra.mxu0 %v922
        %936 = vmatprep.subr.bf16.mxu0 0
        %937 = vmatpush1.bf16.msra.mxu0 %v921
        %938 = vmatprep.subr.bf16.mxu0 0
        %939 = vmatpush1.bf16.msra.mxu0 %v920
        %940 = vmatprep.subr.bf16.mxu0 0
        %941 = vmatpush1.bf16.msra.mxu0 %v919
        %942 = vmatprep.subr.bf16.mxu0 0
        %943 = vmatpush1.bf16.msra.mxu0 %v918
        %944 = vmatprep.subr.bf16.mxu0 0
        %945 = vmatpush1.bf16.msra.mxu0 %v917
        %946 = vmatprep.subr.bf16.mxu0 0
        %947 = vmatpush1.bf16.msra.mxu0 %v916
        %948 = vmatprep.subr.bf16.mxu0 0
        %949 = vmatpush2.bf16.msra.mxu0 0
        %950 = vmatprep.subr.bf16.mxu0 0
        %951 = vmatpush2.bf16.msra.mxu0 0
        %952 = vmatprep.subr.bf16.mxu0 0
        %953 = vmatpush2.bf16.msra.mxu0 0
        %954 = vmatprep.subr.bf16.mxu0 0
        %955 = vmatpush2.bf16.msra.mxu0 0
        %956 = vmatprep.subr.bf16.mxu0 0
        %957 = vmatpush2.bf16.msra.mxu0 0
        %958 = vmatprep.subr.bf16.mxu0 0
        %959 = vmatpush2.bf16.msra.mxu0 0
        %960 = vmatprep.subr.bf16.mxu0 0
        %961 = vmatpush2.bf16.msra.mxu0 0
        %962 = vmatprep.subr.bf16.mxu0 0
        %963 = vmatpush2.bf16.msra.mxu0 0
        %964 = vmatprep.mubr.bf16.mxu0 0
        %965 = vmatmul.mubr.bf16.gmra.mxu0 %v882
        %v966 = vpop.f32.mrf.mxu0
        %v967 = vadd.f32 0.0, %v966
        %v968 = vpop.f32.mrf.mxu0
        %v969 = vpop.f32.mrf.mxu0
        %v970 = vadd.f32 0.0, %v969
        %v971 = vpop.f32.mrf.mxu0
        %972 = vdwg.mxu0
        %v973 = vadd.f32 %v849, %v967
        %v974 = vadd.f32 %v850, %v970
        %s975 = scalar_lea.vmem %s3, 320
        %v976 = vld [vmem:[%s975] sm:$0xf]
        %v977 = vld [vmem:[%s975 + $0x4] sm:$0xf]
        %v978 = vld [vmem:[%s975 + $0x8] sm:$0xf]
        %v979 = vld [vmem:[%s975 + $0xc] sm:$0xf]
        %v980 = vld [vmem:[%s975 + $0x10] sm:$0xf]
        %v981 = vld [vmem:[%s975 + $0x14] sm:$0xf]
        %v982 = vld [vmem:[%s975 + $0x18] sm:$0xf]
        %v983 = vld [vmem:[%s975 + $0x1c] sm:$0xf]
        %v984 = vld [vmem:[%s975 + $0x20] sm:$0xf]
        %v985 = vld [vmem:[%s975 + $0x24] sm:$0xf]
        %v986 = vld [vmem:[%s975 + $0x28] sm:$0xf]
        %v987 = vld [vmem:[%s975 + $0x2c] sm:$0xf]
        %v988 = vld [vmem:[%s975 + $0x30] sm:$0xf]
        %v989 = vld [vmem:[%s975 + $0x34] sm:$0xf]
        %v990 = vld [vmem:[%s975 + $0x38] sm:$0xf]
        %v991 = vld [vmem:[%s975 + $0x3c] sm:$0xf]
        %v992 = vrot.slane %v758, 1
        %v993 = vrot.slane %v870, 1
        %v994 = vsel %vm638, %v992, %v993
        %v1012 = vunpack.c.l.b16 %v976
        %v1013 = vunpack.c.l.b16 %v977
        %v1014 = vunpack.c.l.b16 %v978
        %v1015 = vunpack.c.l.b16 %v979
        %v1016 = vunpack.c.l.b16 %v980
        %v1017 = vunpack.c.l.b16 %v981
        %v1018 = vunpack.c.l.b16 %v982
        %v1019 = vunpack.c.l.b16 %v983
        %v1020 = vunpack.c.l.b16 %v984
        %v1021 = vunpack.c.l.b16 %v985
        %v1022 = vunpack.c.l.b16 %v986
        %v1023 = vunpack.c.l.b16 %v987
        %v1024 = vunpack.c.l.b16 %v988
        %v1025 = vunpack.c.l.b16 %v989
        %v1026 = vunpack.c.l.b16 %v990
        %v1027 = vunpack.c.l.b16 %v991
        %v1028 = vpack.c.b16 %v1013, %v1012
        %v1029 = vpack.c.b16 %v1015, %v1014
        %v1030 = vpack.c.b16 %v1017, %v1016
        %v1031 = vpack.c.b16 %v1019, %v1018
        %v1032 = vpack.c.b16 %v1021, %v1020
        %v1033 = vpack.c.b16 %v1023, %v1022
        %v1034 = vpack.c.b16 %v1025, %v1024
        %v1035 = vpack.c.b16 %v1027, %v1026
        %1044 = vmatprep.subr.bf16.mxu0 0
        %1045 = vmatpush1.bf16.msra.mxu0 %v1035
        %1046 = vmatprep.subr.bf16.mxu0 0
        %1047 = vmatpush1.bf16.msra.mxu0 %v1034
        %1048 = vmatprep.subr.bf16.mxu0 0
        %1049 = vmatpush1.bf16.msra.mxu0 %v1033
        %1050 = vmatprep.subr.bf16.mxu0 0
        %1051 = vmatpush1.bf16.msra.mxu0 %v1032
        %1052 = vmatprep.subr.bf16.mxu0 0
        %1053 = vmatpush1.bf16.msra.mxu0 %v1031
        %1054 = vmatprep.subr.bf16.mxu0 0
        %1055 = vmatpush1.bf16.msra.mxu0 %v1030
        %1056 = vmatprep.subr.bf16.mxu0 0
        %1057 = vmatpush1.bf16.msra.mxu0 %v1029
        %1058 = vmatprep.subr.bf16.mxu0 0
        %1059 = vmatpush1.bf16.msra.mxu0 %v1028
        %1060 = vmatprep.subr.bf16.mxu0 0
        %1061 = vmatpush2.bf16.msra.mxu0 0
        %1062 = vmatprep.subr.bf16.mxu0 0
        %1063 = vmatpush2.bf16.msra.mxu0 0
        %1064 = vmatprep.subr.bf16.mxu0 0
        %1065 = vmatpush2.bf16.msra.mxu0 0
        %1066 = vmatprep.subr.bf16.mxu0 0
        %1067 = vmatpush2.bf16.msra.mxu0 0
        %1068 = vmatprep.subr.bf16.mxu0 0
        %1069 = vmatpush2.bf16.msra.mxu0 0
        %1070 = vmatprep.subr.bf16.mxu0 0
        %1071 = vmatpush2.bf16.msra.mxu0 0
        %1072 = vmatprep.subr.bf16.mxu0 0
        %1073 = vmatpush2.bf16.msra.mxu0 0
        %1074 = vmatprep.subr.bf16.mxu0 0
        %1075 = vmatpush2.bf16.msra.mxu0 0
        %1076 = vmatprep.mubr.bf16.mxu0 0
        %1077 = vmatmul.mubr.bf16.gmra.mxu0 %v994
        %v1078 = vpop.f32.mrf.mxu0
        %v1079 = vadd.f32 0.0, %v1078
        %v1080 = vpop.f32.mrf.mxu0
        %v1081 = vpop.f32.mrf.mxu0
        %v1082 = vadd.f32 0.0, %v1081
        %v1083 = vpop.f32.mrf.mxu0
        %1084 = vdwg.mxu0
        %v1085 = vadd.f32 %v973, %v1079
        %v1086 = vadd.f32 %v974, %v1082
        %v1087 = vld [vmem:[%s381] sm:$0xf]
        %v1088 = vld [vmem:[%s381 + $0x4] sm:$0xf]
        %v1089 = vld [vmem:[%s381 + $0x8] sm:$0x1]
        %s1090 = scalar_lea.vmem %s3, 384
        %v1091 = vld [vmem:[%s1090] sm:$0xf]
        %v1092 = vld [vmem:[%s1090 + $0x4] sm:$0xf]
        %v1093 = vld [vmem:[%s1090 + $0x8] sm:$0xf]
        %v1094 = vld [vmem:[%s1090 + $0xc] sm:$0xf]
        %v1095 = vld [vmem:[%s1090 + $0x10] sm:$0xf]
        %v1096 = vld [vmem:[%s1090 + $0x14] sm:$0xf]
        %v1097 = vld [vmem:[%s1090 + $0x18] sm:$0xf]
        %v1098 = vld [vmem:[%s1090 + $0x1c] sm:$0xf]
        %v1099 = vld [vmem:[%s1090 + $0x20] sm:$0xf]
        %v1100 = vld [vmem:[%s1090 + $0x24] sm:$0xf]
        %v1101 = vld [vmem:[%s1090 + $0x28] sm:$0xf]
        %v1102 = vld [vmem:[%s1090 + $0x2c] sm:$0xf]
        %v1103 = vld [vmem:[%s1090 + $0x30] sm:$0xf]
        %v1104 = vld [vmem:[%s1090 + $0x34] sm:$0xf]
        %v1105 = vld [vmem:[%s1090 + $0x38] sm:$0xf]
        %v1106 = vld [vmem:[%s1090 + $0x3c] sm:$0xf]
        %v1109 = vunpack.c.l.b16 %v1087
        %v1110 = vunpack.c.l.b16 %v1088
        %v1111 = vpack.c.b16 %v1110, %v1109
        %v1129 = vunpack.c.l.b16 %v1091
        %v1130 = vunpack.c.l.b16 %v1092
        %v1131 = vunpack.c.l.b16 %v1093
        %v1132 = vunpack.c.l.b16 %v1094
        %v1133 = vunpack.c.l.b16 %v1095
        %v1134 = vunpack.c.l.b16 %v1096
        %v1135 = vunpack.c.l.b16 %v1097
        %v1136 = vunpack.c.l.b16 %v1098
        %v1137 = vunpack.c.l.b16 %v1099
        %v1138 = vunpack.c.l.b16 %v1100
        %v1139 = vunpack.c.l.b16 %v1101
        %v1140 = vunpack.c.l.b16 %v1102
        %v1141 = vunpack.c.l.b16 %v1103
        %v1142 = vunpack.c.l.b16 %v1104
        %v1143 = vunpack.c.l.b16 %v1105
        %v1144 = vunpack.c.l.b16 %v1106
        %v1145 = vpack.c.b16 %v1130, %v1129
        %v1146 = vpack.c.b16 %v1132, %v1131
        %v1147 = vpack.c.b16 %v1134, %v1133
        %v1148 = vpack.c.b16 %v1136, %v1135
        %v1149 = vpack.c.b16 %v1138, %v1137
        %v1150 = vpack.c.b16 %v1140, %v1139
        %v1151 = vpack.c.b16 %v1142, %v1141
        %v1152 = vpack.c.b16 %v1144, %v1143
        %1161 = vmatprep.subr.bf16.mxu0 0
        %1162 = vmatpush1.bf16.msra.mxu0 %v1152
        %1163 = vmatprep.subr.bf16.mxu0 0
        %1164 = vmatpush1.bf16.msra.mxu0 %v1151
        %1165 = vmatprep.subr.bf16.mxu0 0
        %1166 = vmatpush1.bf16.msra.mxu0 %v1150
        %1167 = vmatprep.subr.bf16.mxu0 0
        %1168 = vmatpush1.bf16.msra.mxu0 %v1149
        %1169 = vmatprep.subr.bf16.mxu0 0
        %1170 = vmatpush1.bf16.msra.mxu0 %v1148
        %1171 = vmatprep.subr.bf16.mxu0 0
        %1172 = vmatpush1.bf16.msra.mxu0 %v1147
        %1173 = vmatprep.subr.bf16.mxu0 0
        %1174 = vmatpush1.bf16.msra.mxu0 %v1146
        %1175 = vmatprep.subr.bf16.mxu0 0
        %1176 = vmatpush1.bf16.msra.mxu0 %v1145
        %1177 = vmatprep.subr.bf16.mxu0 0
        %1178 = vmatpush2.bf16.msra.mxu0 0
        %1179 = vmatprep.subr.bf16.mxu0 0
        %1180 = vmatpush2.bf16.msra.mxu0 0
        %1181 = vmatprep.subr.bf16.mxu0 0
        %1182 = vmatpush2.bf16.msra.mxu0 0
        %1183 = vmatprep.subr.bf16.mxu0 0
        %1184 = vmatpush2.bf16.msra.mxu0 0
        %1185 = vmatprep.subr.bf16.mxu0 0
        %1186 = vmatpush2.bf16.msra.mxu0 0
        %1187 = vmatprep.subr.bf16.mxu0 0
        %1188 = vmatpush2.bf16.msra.mxu0 0
        %1189 = vmatprep.subr.bf16.mxu0 0
        %1190 = vmatpush2.bf16.msra.mxu0 0
        %1191 = vmatprep.subr.bf16.mxu0 0
        %1192 = vmatpush2.bf16.msra.mxu0 0
        %1193 = vmatprep.mubr.bf16.mxu0 0
        %1194 = vmatmul.mubr.bf16.gmra.mxu0 %v1111
        %v1195 = vpop.f32.mrf.mxu0
        %v1196 = vadd.f32 0.0, %v1195
        %v1197 = vpop.f32.mrf.mxu0
        %v1198 = vpop.f32.mrf.mxu0
        %v1199 = vadd.f32 0.0, %v1198
        %v1200 = vpop.f32.mrf.mxu0
        %1201 = vdwg.mxu0
        %v1202 = vadd.f32 %v1085, %v1196
        %v1203 = vadd.f32 %v1086, %v1199
        %s1204 = scalar_lea.vmem %s3, 448
        %v1205 = vld [vmem:[%s1204] sm:$0xf]
        %v1206 = vld [vmem:[%s1204 + $0x4] sm:$0xf]
        %v1207 = vld [vmem:[%s1204 + $0x8] sm:$0xf]
        %v1208 = vld [vmem:[%s1204 + $0xc] sm:$0xf]
        %v1209 = vld [vmem:[%s1204 + $0x10] sm:$0xf]
        %v1210 = vld [vmem:[%s1204 + $0x14] sm:$0xf]
        %v1211 = vld [vmem:[%s1204 + $0x18] sm:$0xf]
        %v1212 = vld [vmem:[%s1204 + $0x1c] sm:$0xf]
        %v1213 = vld [vmem:[%s1204 + $0x20] sm:$0xf]
        %v1214 = vld [vmem:[%s1204 + $0x24] sm:$0xf]
        %v1215 = vld [vmem:[%s1204 + $0x28] sm:$0xf]
        %v1216 = vld [vmem:[%s1204 + $0x2c] sm:$0xf]
        %v1217 = vld [vmem:[%s1204 + $0x30] sm:$0xf]
        %v1218 = vld [vmem:[%s1204 + $0x34] sm:$0xf]
        %v1219 = vld [vmem:[%s1204 + $0x38] sm:$0xf]
        %v1220 = vld [vmem:[%s1204 + $0x3c] sm:$0xf]
        %v1222 = vunpack.c.l.b16 %v1089
        %v1223 = vpack.c.b16 %v1222, %v1222
        %v1225 = vshrl.u32 %v1111, 16
        %v1227 = vshll.u32 %v1111, 16
        %v1229 = vrot.slane %v1227, 1
        %v1230 = vor.u32 %v1225, %v1229
        %v1232 = vshll.u32 %v1223, 16
        %v1234 = vrot.slane %v1232, 1
        %v1235 = vsel %vm428, %v1230, %v1234
        %v1253 = vunpack.c.l.b16 %v1205
        %v1254 = vunpack.c.l.b16 %v1206
        %v1255 = vunpack.c.l.b16 %v1207
        %v1256 = vunpack.c.l.b16 %v1208
        %v1257 = vunpack.c.l.b16 %v1209
        %v1258 = vunpack.c.l.b16 %v1210
        %v1259 = vunpack.c.l.b16 %v1211
        %v1260 = vunpack.c.l.b16 %v1212
        %v1261 = vunpack.c.l.b16 %v1213
        %v1262 = vunpack.c.l.b16 %v1214
        %v1263 = vunpack.c.l.b16 %v1215
        %v1264 = vunpack.c.l.b16 %v1216
        %v1265 = vunpack.c.l.b16 %v1217
        %v1266 = vunpack.c.l.b16 %v1218
        %v1267 = vunpack.c.l.b16 %v1219
        %v1268 = vunpack.c.l.b16 %v1220
        %v1269 = vpack.c.b16 %v1254, %v1253
        %v1270 = vpack.c.b16 %v1256, %v1255
        %v1271 = vpack.c.b16 %v1258, %v1257
        %v1272 = vpack.c.b16 %v1260, %v1259
        %v1273 = vpack.c.b16 %v1262, %v1261
        %v1274 = vpack.c.b16 %v1264, %v1263
        %v1275 = vpack.c.b16 %v1266, %v1265
        %v1276 = vpack.c.b16 %v1268, %v1267
        %1285 = vmatprep.subr.bf16.mxu0 0
        %1286 = vmatpush1.bf16.msra.mxu0 %v1276
        %1287 = vmatprep.subr.bf16.mxu0 0
        %1288 = vmatpush1.bf16.msra.mxu0 %v1275
        %1289 = vmatprep.subr.bf16.mxu0 0
        %1290 = vmatpush1.bf16.msra.mxu0 %v1274
        %1291 = vmatprep.subr.bf16.mxu0 0
        %1292 = vmatpush1.bf16.msra.mxu0 %v1273
        %1293 = vmatprep.subr.bf16.mxu0 0
        %1294 = vmatpush1.bf16.msra.mxu0 %v1272
        %1295 = vmatprep.subr.bf16.mxu0 0
        %1296 = vmatpush1.bf16.msra.mxu0 %v1271
        %1297 = vmatprep.subr.bf16.mxu0 0
        %1298 = vmatpush1.bf16.msra.mxu0 %v1270
        %1299 = vmatprep.subr.bf16.mxu0 0
        %1300 = vmatpush1.bf16.msra.mxu0 %v1269
        %1301 = vmatprep.subr.bf16.mxu0 0
        %1302 = vmatpush2.bf16.msra.mxu0 0
        %1303 = vmatprep.subr.bf16.mxu0 0
        %1304 = vmatpush2.bf16.msra.mxu0 0
        %1305 = vmatprep.subr.bf16.mxu0 0
        %1306 = vmatpush2.bf16.msra.mxu0 0
        %1307 = vmatprep.subr.bf16.mxu0 0
        %1308 = vmatpush2.bf16.msra.mxu0 0
        %1309 = vmatprep.subr.bf16.mxu0 0
        %1310 = vmatpush2.bf16.msra.mxu0 0
        %1311 = vmatprep.subr.bf16.mxu0 0
        %1312 = vmatpush2.bf16.msra.mxu0 0
        %1313 = vmatprep.subr.bf16.mxu0 0
        %1314 = vmatpush2.bf16.msra.mxu0 0
        %1315 = vmatprep.subr.bf16.mxu0 0
        %1316 = vmatpush2.bf16.msra.mxu0 0
        %1317 = vmatprep.mubr.bf16.mxu0 0
        %1318 = vmatmul.mubr.bf16.gmra.mxu0 %v1235
        %v1319 = vpop.f32.mrf.mxu0
        %v1320 = vadd.f32 0.0, %v1319
        %v1321 = vpop.f32.mrf.mxu0
        %v1322 = vpop.f32.mrf.mxu0
        %v1323 = vadd.f32 0.0, %v1322
        %v1324 = vpop.f32.mrf.mxu0
        %1325 = vdwg.mxu0
        %v1326 = vadd.f32 %v1202, %v1320
        %v1327 = vadd.f32 %v1203, %v1323
        %s1328 = scalar_lea.vmem %s3, 512
        %v1329 = vld [vmem:[%s1328] sm:$0xf]
        %v1330 = vld [vmem:[%s1328 + $0x4] sm:$0xf]
        %v1331 = vld [vmem:[%s1328 + $0x8] sm:$0xf]
        %v1332 = vld [vmem:[%s1328 + $0xc] sm:$0xf]
        %v1333 = vld [vmem:[%s1328 + $0x10] sm:$0xf]
        %v1334 = vld [vmem:[%s1328 + $0x14] sm:$0xf]
        %v1335 = vld [vmem:[%s1328 + $0x18] sm:$0xf]
        %v1336 = vld [vmem:[%s1328 + $0x1c] sm:$0xf]
        %v1337 = vld [vmem:[%s1328 + $0x20] sm:$0xf]
        %v1338 = vld [vmem:[%s1328 + $0x24] sm:$0xf]
        %v1339 = vld [vmem:[%s1328 + $0x28] sm:$0xf]
        %v1340 = vld [vmem:[%s1328 + $0x2c] sm:$0xf]
        %v1341 = vld [vmem:[%s1328 + $0x30] sm:$0xf]
        %v1342 = vld [vmem:[%s1328 + $0x34] sm:$0xf]
        %v1343 = vld [vmem:[%s1328 + $0x38] sm:$0xf]
        %v1344 = vld [vmem:[%s1328 + $0x3c] sm:$0xf]
        %v1345 = vrot.slane %v1111, 1
        %v1346 = vrot.slane %v1223, 1
        %v1347 = vsel %vm638, %v1345, %v1346
        %v1365 = vunpack.c.l.b16 %v1329
        %v1366 = vunpack.c.l.b16 %v1330
        %v1367 = vunpack.c.l.b16 %v1331
        %v1368 = vunpack.c.l.b16 %v1332
        %v1369 = vunpack.c.l.b16 %v1333
        %v1370 = vunpack.c.l.b16 %v1334
        %v1371 = vunpack.c.l.b16 %v1335
        %v1372 = vunpack.c.l.b16 %v1336
        %v1373 = vunpack.c.l.b16 %v1337
        %v1374 = vunpack.c.l.b16 %v1338
        %v1375 = vunpack.c.l.b16 %v1339
        %v1376 = vunpack.c.l.b16 %v1340
        %v1377 = vunpack.c.l.b16 %v1341
        %v1378 = vunpack.c.l.b16 %v1342
        %v1379 = vunpack.c.l.b16 %v1343
        %v1380 = vunpack.c.l.b16 %v1344
        %v1381 = vpack.c.b16 %v1366, %v1365
        %v1382 = vpack.c.b16 %v1368, %v1367
        %v1383 = vpack.c.b16 %v1370, %v1369
        %v1384 = vpack.c.b16 %v1372, %v1371
        %v1385 = vpack.c.b16 %v1374, %v1373
        %v1386 = vpack.c.b16 %v1376, %v1375
        %v1387 = vpack.c.b16 %v1378, %v1377
        %v1388 = vpack.c.b16 %v1380, %v1379
        %1397 = vmatprep.subr.bf16.mxu0 0
        %1398 = vmatpush1.bf16.msra.mxu0 %v1388
        %1399 = vmatprep.subr.bf16.mxu0 0
        %1400 = vmatpush1.bf16.msra.mxu0 %v1387
        %1401 = vmatprep.subr.bf16.mxu0 0
        %1402 = vmatpush1.bf16.msra.mxu0 %v1386
        %1403 = vmatprep.subr.bf16.mxu0 0
        %1404 = vmatpush1.bf16.msra.mxu0 %v1385
        %1405 = vmatprep.subr.bf16.mxu0 0
        %1406 = vmatpush1.bf16.msra.mxu0 %v1384
        %1407 = vmatprep.subr.bf16.mxu0 0
        %1408 = vmatpush1.bf16.msra.mxu0 %v1383
        %1409 = vmatprep.subr.bf16.mxu0 0
        %1410 = vmatpush1.bf16.msra.mxu0 %v1382
        %1411 = vmatprep.subr.bf16.mxu0 0
        %1412 = vmatpush1.bf16.msra.mxu0 %v1381
        %1413 = vmatprep.subr.bf16.mxu0 0
        %1414 = vmatpush2.bf16.msra.mxu0 0
        %1415 = vmatprep.subr.bf16.mxu0 0
        %1416 = vmatpush2.bf16.msra.mxu0 0
        %1417 = vmatprep.subr.bf16.mxu0 0
        %1418 = vmatpush2.bf16.msra.mxu0 0
        %1419 = vmatprep.subr.bf16.mxu0 0
        %1420 = vmatpush2.bf16.msra.mxu0 0
        %1421 = vmatprep.subr.bf16.mxu0 0
        %1422 = vmatpush2.bf16.msra.mxu0 0
        %1423 = vmatprep.subr.bf16.mxu0 0
        %1424 = vmatpush2.bf16.msra.mxu0 0
        %1425 = vmatprep.subr.bf16.mxu0 0
        %1426 = vmatpush2.bf16.msra.mxu0 0
        %1427 = vmatprep.subr.bf16.mxu0 0
        %1428 = vmatpush2.bf16.msra.mxu0 0
        %1429 = vmatprep.mubr.bf16.mxu0 0
        %1430 = vmatmul.mubr.bf16.gmra.mxu0 %v1347
        %v1431 = vpop.f32.mrf.mxu0
        %v1432 = vadd.f32 0.0, %v1431
        %v1433 = vpop.f32.mrf.mxu0
        %v1434 = vpop.f32.mrf.mxu0
        %v1435 = vadd.f32 0.0, %v1434
        %v1436 = vpop.f32.mrf.mxu0
        %1437 = vdwg.mxu0
        %v1438 = vadd.f32 %v1326, %v1432
        %v1439 = vadd.f32 %v1327, %v1435
        %v1440 = vld [vmem:[%s4] sm:$0x1]
        %v1442 = vlaneseq
        %v1443 = vshrl.u32 %v1442, 7
        %v1444 = vsub.s32 0, %v1443
        %v1445 = vrot.slane %v1440, %v1444
        %v1447 = vadd.f32 %v1438, %v1445
        %v1448 = vadd.f32 %v1439, %v1445
        %1449 = vst [vmem:[%s347] sm:$0xff] %v1447
        %1450 = vst [vmem:[%s347 + $0x8] sm:$0xff] %v1448
        %p1451 = scmp.eq.s32.totalorder %s27, 0
        %p1452 = scmp.eq.s32.totalorder %s28, 0
        %p1453 = pnand %p1451, %p1452
        %p1454 = pneg %p1453
        // Predicated region
        $region41: #{tpu_custom_call.1} parent=39 // pred_check
          _
        $region42: #{tpu_custom_call.1} parent=39 // pred_check_branch
          %1456 = sbr.rel (%p1453) target = $region44
        $region43: #{tpu_custom_call.1} parent=39 // pred_region
          %1457 = vst [vmem:[#allocation4] sm:$0x1] 0.0
          %1458 = vst [vmem:[#allocation6] sm:$0x1] 0.0
        $region44: #{tpu_custom_call.1} parent=39 // pred_fallthru
          _
        %v1459 = vld [vmem:[#allocation4] sm:$0x1]
        %v1460 = vadd.f32 %v1447, %v1448
        %v1461 = vrot.slane %v1460, 4
        %v1462 = vadd.f32 %v1460, %v1461
        %v1463 = vrot.slane %v1462, 2
        %v1464 = vadd.f32 %v1462, %v1463
        %v1465 = vrot.slane %v1464, 1
        %v1466 = vadd.f32 %v1464, %v1465
        %v1467 = vadd.f32 %v1459, %v1466
        %1468 = vst [vmem:[#allocation4] sm:$0x1] %v1467
        %v1469 = vld [vmem:[#allocation6] sm:$0x1]
        %v1470 = vmul.f32 %v1447, %v1447
        %v1471 = vmul.f32 %v1448, %v1448
        %v1472 = vadd.f32 %v1470, %v1471
        %v1473 = vrot.slane %v1472, 4
        %v1474 = vadd.f32 %v1472, %v1473
        %v1475 = vrot.slane %v1474, 2
        %v1476 = vadd.f32 %v1474, %v1475
        %v1477 = vrot.slane %v1476, 1
        %v1478 = vadd.f32 %v1476, %v1477
        %v1479 = vadd.f32 %v1469, %v1478
        %1480 = vst [vmem:[#allocation6] sm:$0x1] %v1479
        %s1481 = sand.u32 %s175, 1
        %s1482 = scalar_lea.sflag [#allocation3], %s1481
        %s1483 = sand.u32 %s175, 1
        %s1484 = smul.addr %s1483, 16
        %s1485 = scalar_lea.vmem [#allocation2], %s1484
        // Predicated region
        $region45: #{tpu_custom_call.1} parent=39 // pred_check
          %p1486 = pneg %p185
        $region46: #{tpu_custom_call.1} parent=39 // pred_check_branch
          %1488 = sbr.rel (%p1486) target = $region48
        $region47: #{tpu_custom_call.1} parent=39 // pred_region
          %s1490 = ssub.s32 256, 256
          %1491 = vsyncadd %s1482, %s1490
          %s1492 = smul.addr %s28, 2
          %s1493 = smul.addr %s27, 32
          %s1494 = sadd.s32 %s1492, %s1493
          %s1495 = smul.addr %s1494, 128
          %s1496 = scalar_lea.hbm %s5, %s1495
          %s1497 = sshll.u32 %s1485, 4
          %s1498 = int_to_ptr.vmem [resolvable:$true] %s1497
          %1503 = dma.vmem_to_hbm [thread:$0]  %s1498, 256, %s1496, %s1482, 128, 128, 8
        $region48: #{tpu_custom_call.1} parent=39 // pred_fallthru
          _
        // Predicated region
        $region49: #{tpu_custom_call.1} parent=39 // pred_check
          %p1504 = pneg %p206
        $region50: #{tpu_custom_call.1} parent=39 // pred_check_branch
          %1506 = sbr.rel (%p1504) target = $region52
        $region51: #{tpu_custom_call.1} parent=39 // pred_region
          %s1508 = ssub.s32 16, 16
          %1509 = vsyncadd [#allocation5], %s1508
          %s1511 = sshll.u32 [#allocation4], 4
          %s1512 = int_to_ptr.vmem [resolvable:$true] %s1511
          %1514 = dma.vmem_to_hbm [thread:$0]  %s1512, 16, %s6, [#allocation5]
        $region52: #{tpu_custom_call.1} parent=39 // pred_fallthru
          _
        // Predicated region
        $region53: #{tpu_custom_call.1} parent=39 // pred_check
          %p1515 = pneg %p227
        $region54: #{tpu_custom_call.1} parent=39 // pred_check_branch
          %1517 = sbr.rel (%p1515) target = $region56
        $region55: #{tpu_custom_call.1} parent=39 // pred_region
          %s1519 = ssub.s32 16, 16
          %1520 = vsyncadd [#allocation5], %s1519
          %s1522 = sshll.u32 [#allocation6], 4
          %s1523 = int_to_ptr.vmem [resolvable:$true] %s1522
          %1525 = dma.vmem_to_hbm [thread:$0]  %s1523, 16, %s7, [#allocation5]
        $region56: #{tpu_custom_call.1} parent=39 // pred_fallthru
          _
        // Predicated region
        $region57: #{tpu_custom_call.1} parent=39 // pred_check
          %p1526 = pneg %p206
        $region58: #{tpu_custom_call.1} parent=39 // pred_check_branch
          %1528 = sbr.rel (%p1526) target = $region60
        $region59: #{tpu_custom_call.1} parent=39 // pred_region
          %1529 = dma.done [#allocation5], 16
        $region60: #{tpu_custom_call.1} parent=39 // pred_fallthru
          _
        // Predicated region
        $region61: #{tpu_custom_call.1} parent=39 // pred_check
          %p1530 = pneg %p227
        $region62: #{tpu_custom_call.1} parent=39 // pred_check_branch
          %1532 = sbr.rel (%p1530) target = $region64
        $region63: #{tpu_custom_call.1} parent=39 // pred_region
          %1533 = dma.done [#allocation5], 16
        $region64: #{tpu_custom_call.1} parent=39 // pred_fallthru
          _
      $region40: #{tpu_custom_call.1} parent=5 // pred_fallthru
        _
      %p1534 = scmp.le.s32.totalorder 2, %s18
      // Predicated region
      $region65: #{tpu_custom_call.1} parent=5 // pred_check
        %p1535 = pneg %p1534
      $region66: #{tpu_custom_call.1} parent=5 // pred_check_branch
        %1537 = sbr.rel (%p1535) target = $region68
      $region67: #{tpu_custom_call.1} parent=5 // pred_region
        %s1538 = ssub.s32 %s18, 2
        // Predicated region
        $region69: #{tpu_custom_call.1} parent=67 // pred_check
          %p1539 = pneg %p191
        $region70: #{tpu_custom_call.1} parent=67 // pred_check_branch
          %1541 = sbr.rel (%p1539) target = $region72
        $region71: #{tpu_custom_call.1} parent=67 // pred_region
          %s1542 = sand.u32 %s176, 1
          %s1543 = scalar_lea.sflag [#allocation3], %s1542
          %s1544 = sand.u32 %s176, 1
          %s1545 = smul.addr %s1544, 16
          %s1546 = scalar_lea.vmem [#allocation2], %s1545
          %1547 = dma.done %s1543, 256
        $region72: #{tpu_custom_call.1} parent=67 // pred_fallthru
          _
      $region68: #{tpu_custom_call.1} parent=5 // pred_fallthru
        _
    $region6: #{tpu_custom_call.1} parent=1 // loop_footer
      %s22 = sadd.s32 1, %s18
    $region7: #{tpu_custom_call.1} parent=1 // loop_footer_branch
      %17 = sbr.rel target = $region3
    $region8: #{tpu_custom_call.1} parent=1 // loop_exit
      _
    %1548 = vsyncpa [#allocation3], 1
    %s1549 = scalar_lea.sflag [#allocation3], 1
    %1550 = vsyncpa %s1549, 1
    %1551 = vsyncpa [#allocation5], 1

</llo_original>
